<compile_context>
chip_gen: v7x
topology: tpu7x:2x2x1
jax: 0.10.0
libtpu: 0.0.40
codegen_flags: <defaults>
</compile_context>

<pallas_src>
import functools
import math

import jax
import jax.numpy as jnp
from jax import lax
from jax.experimental import pallas as pl
from jax.experimental.pallas import tpu as pltpu


# ----------------------------- helpers -------------------------------------
def _layernorm(x, w, b, eps=1e-5):
    # LayerNorm in fp32 (matches CLIP's LayerNorm subclass); rsqrt -> EUP slot.
    m = jnp.mean(x, axis=-1, keepdims=True)
    xc = x - m
    v = jnp.mean(xc * xc, axis=-1, keepdims=True)
    return xc * lax.rsqrt(v + eps) * w + b


# --------------------- conv1: 1x1 conv, no bias (Pallas) --------------------
def _conv1x1_kernel(x_ref, w_ref, o_ref):
    # x_ref: (Cin, B*H*W) bf16, w_ref: (Cout, Cin) bf16 -> single lane-dense matmul
    o_ref[...] = jnp.dot(w_ref[...], x_ref[...], preferred_element_type=jnp.float32)


def conv1x1(x_nchw, w_bf16):
    B, C, H, W = x_nchw.shape
    Cout = w_bf16.shape[0]
    # Kernel is pure DMA-bound (K=Cin=3 can't feed the MXU): halve the streamed
    # bytes by casting the activation slab to bf16 in the wrapper.
    x2 = jnp.transpose(x_nchw, (1, 0, 2, 3)).reshape(C, B * H * W).astype(jnp.bfloat16)
    out = pl.pallas_call(
        _conv1x1_kernel,
        out_shape=jax.ShapeDtypeStruct((Cout, B * H * W), jnp.float32),
    )(x2, w_bf16)
    return jnp.transpose(out.reshape(Cout, B, H, W), (1, 0, 2, 3))


# ------------- fused Transformer (all ResidualAttentionBlocks) --------------
def _transformer_kernel(x_ref, mask_ref,
                        ln1w_ref, ln1b_ref, wqkv_ref, bqkv_ref, wout_ref, bout_ref,
                        ln2w_ref, ln2b_ref, wfc_ref, bfc_ref, wproj_ref, bproj_ref,
                        o_ref, *, n_head):
    layer = pl.program_id(1)

    # layer 0: bring the embedded tokens into the resident output block
    @pl.when(layer == 0)
    def _init():
        o_ref[...] = x_ref[...]

    x = o_ref[...]                                  # (Bb, S, W) fp32, VMEM-resident
    Bb, S, W = x.shape
    H = n_head
    Dh = W // H
    N = Bb * S

    # ---------------- attention: x + out_proj(MHA(ln_1(x))) ----------------
    h = _layernorm(x, ln1w_ref[...], ln1b_ref[...]).reshape(N, W)
    # Fused QKV: one lane-dense (N, W) @ (W, 3W) bf16 matmul, fp32 accumulate.
    # The 1/sqrt(Dh) scale is already folded into the q columns of w_qkv.
    qkv = jnp.dot(h.astype(jnp.bfloat16), wqkv_ref[...],
                  preferred_element_type=jnp.float32) + bqkv_ref[...]      # (N, 3W)
    qkv = qkv.astype(jnp.bfloat16)
    mask = mask_ref[...][None]                                             # (1, S, S)

    # Per-head attention via static lane slices of the fused QKV result
    # (no activation replication, no (H,N,W) fp32 intermediate).
    head_outs = []
    for hh in range(H):
        qs = qkv[:, hh * Dh:(hh + 1) * Dh].reshape(Bb, S, Dh)
        ks = qkv[:, W + hh * Dh: W + (hh + 1) * Dh].reshape(Bb, S, Dh)
        vs = qkv[:, 2 * W + hh * Dh: 2 * W + (hh + 1) * Dh].reshape(Bb, S, Dh)
        s = lax.dot_general(qs, ks, (((2,), (2,)), ((0,), (0,))),
                            preferred_element_type=jnp.float32) + mask     # (Bb,S,S)
        s = s - jnp.max(s, axis=-1, keepdims=True)
        s = jnp.exp(s)
        s = s * pl.reciprocal(jnp.sum(s, axis=-1, keepdims=True), approx=True)
        head_outs.append(
            lax.dot_general(s.astype(jnp.bfloat16), vs, (((2,), (1,)), ((0,), (0,))),
                            preferred_element_type=jnp.float32))           # (Bb,S,Dh)

    attn = jnp.concatenate(head_outs, axis=-1).reshape(N, W)               # (N, W)
    # out_proj as ONE (N,W)@(W,W) matmul (K = full width, no per-head sum).
    proj = jnp.dot(attn.astype(jnp.bfloat16), wout_ref[...],
                   preferred_element_type=jnp.float32) + bout_ref[...]     # (N, W)
    x = x + proj.reshape(Bb, S, W)

    # ---------------- MLP: x + c_proj(QuickGELU(c_fc(ln_2(x)))) ----------------
    # TODO(synk): at production widths chunk the 4W hidden axis (fori_loop over
    # >=512-wide chunks) so the fp32 mfc slab fits v7x's 64 MiB VMEM.
    h2 = _layernorm(x, ln2w_ref[...], ln2b_ref[...]).reshape(N, W)
    mfc = jnp.dot(h2.astype(jnp.bfloat16), wfc_ref[...],
                  preferred_element_type=jnp.float32) + bfc_ref[...]       # (N, 4W)
    mfc = mfc * jax.nn.sigmoid(1.702 * mfc)                                # QuickGELU
    mpj = jnp.dot(mfc.astype(jnp.bfloat16), wproj_ref[...],
                  preferred_element_type=jnp.float32) + bproj_ref[...]     # (N, W)

    o_ref[...] = x + mpj.reshape(Bb, S, W)


def text_transformer(x_embed, mask, stacked, n_head, block_b=None):
    B, S, W = x_embed.shape
    L = stacked["w_qkv"].shape[0]
    # TODO(synk): on v7x use block_b = B // 2 (grid[0] == 2) so both TensorCores
    # work; on single-TC v5e/v6e keep one batch block to avoid re-streaming the
    # per-layer weights from HBM.
    block_b = B if block_b is None else block_b
    grid = (pl.cdiv(B, block_b), L)

    weight_keys = ("ln1_w", "ln1_b", "w_qkv", "b_qkv", "w_out", "b_out",
                   "ln2_w", "ln2_b", "w_fc", "b_fc", "w_proj", "b_proj")
    w_arrays = [stacked[k] for k in weight_keys]

    def _wspec(a):
        nz = a.ndim - 1
        # Squeeze the stacked layer dim; stream one layer's weights per step.
        return pl.BlockSpec((None,) + a.shape[1:],
                            lambda bb, l, _nz=nz: (l,) + (0,) * _nz)

    # TODO(synk): x_embed is only read at layer 0; could be single-buffered
    # (pipeline_mode=pl.Buffered(1)) to free one VMEM buffer at prod sizes.
    x_spec = pl.BlockSpec((block_b, S, W), lambda bb, l: (bb, 0, 0))
    mask_spec = pl.BlockSpec((S, S), lambda bb, l: (0, 0))

    # TODO(synk): at production CLIP widths (W=768, S=77) pad S to a multiple of
    # 128 (mask pad = -inf) for lane-dense score tiles.
    return pl.pallas_call(
        functools.partial(_transformer_kernel, n_head=n_head),
        out_shape=jax.ShapeDtypeStruct((B, S, W), jnp.float32),
        grid=grid,
        in_specs=[x_spec, mask_spec] + [_wspec(a) for a in w_arrays],
        out_specs=pl.BlockSpec((block_b, S, W), lambda bb, l: (bb, 0, 0)),
        compiler_params=pltpu.CompilerParams(
            dimension_semantics=("parallel", "arbitrary"),
            vmem_limit_bytes=48 * 1024 * 1024),
    )(x_embed, mask, *w_arrays)


# ------- ln_final(EOT rows) + text_projection + normalize + logits ----------
def _text_head_logits_kernel(xe_ref, lnw_ref, lnb_ref, proj_ref, img_ref,
                             scale_ref, li_ref):
    h = _layernorm(xe_ref[...], lnw_ref[...], lnb_ref[...])          # (B, W) fp32
    txt = jnp.dot(h.astype(jnp.bfloat16), proj_ref[...],
                  preferred_element_type=jnp.float32)                # (B, E)
    img = img_ref[...]                                               # (B, E)
    txtn = txt * lax.rsqrt(jnp.sum(txt * txt, axis=-1, keepdims=True))
    imgn = img * lax.rsqrt(jnp.sum(img * img, axis=-1, keepdims=True))
    li_ref[...] = scale_ref[0] * lax.dot_general(
        imgn.astype(jnp.bfloat16), txtn.astype(jnp.bfloat16),
        (((1,), (1,)), ((), ())), preferred_element_type=jnp.float32)


def text_head_and_logits(x_eot, image_features, params):
    B = x_eot.shape[0]
    # exp(logit_scale) is one scalar -> keep it in SMEM (no (8,128) VMEM tile).
    scale = jnp.exp(params["logit_scale"])                           # (1,) fp32
    vmem = pl.BlockSpec(memory_space=pltpu.MemorySpace.VMEM)
    smem = pl.BlockSpec(memory_space=pltpu.MemorySpace.SMEM)
    return pl.pallas_call(
        _text_head_logits_kernel,
        out_shape=jax.ShapeDtypeStruct((B, B), jnp.float32),
        in_specs=[vmem, vmem, vmem, vmem, vmem, smem],
    )(x_eot, params["lnf_w"], params["lnf_b"], params["text_projection"],
      image_features, scale)


# ------------------------------ model glue ----------------------------------
def init_params(key, embed_dim, context_length, vocab_size, width, n_head, layers):
    W = width
    H = n_head
    Dh = W // H
    proj_std = (W ** -0.5) * ((2 * layers) ** -0.5)
    attn_std = W ** -0.5
    fc_std = (2 * W) ** -0.5
    ks = jax.random.split(key, 9)

    p = {}
    p["conv1_w"] = (jax.random.normal(ks[0], (3, 3), jnp.float32)
                    / math.sqrt(3.0)).astype(jnp.bfloat16)
    p["token_embedding"] = jax.random.normal(ks[1], (vocab_size, W), jnp.float32) * 0.02
    p["positional_embedding"] = jax.random.normal(ks[2], (context_length, W),
                                                  jnp.float32) * 0.01
    p["lnf_w"] = jnp.ones((1, W), jnp.float32)
    p["lnf_b"] = jnp.zeros((1, W), jnp.float32)
    p["text_projection"] = (jax.random.normal(ks[3], (W, embed_dim), jnp.float32)
                            * (W ** -0.5)).astype(jnp.bfloat16)
    p["logit_scale"] = jnp.full((1,), math.log(1.0 / 0.07), jnp.float32)
    p["img_proj"] = jax.random.normal(ks[4], (3, embed_dim), jnp.float32) * (3 ** -0.5)
    # build_attention_mask(): -inf strictly above the diagonal, 0 elsewhere
    idx = jnp.arange(context_length)
    p["attn_mask"] = jnp.where(idx[None, :] > idx[:, None],
                               -jnp.inf, 0.0).astype(jnp.float32)

    # ---- transformer weights, stacked over the layer axis for the fused kernel ----
    # PyTorch in_proj_weight is (3W, W) and computes x @ W.T + b; store the
    # transpose (W, 3W) so the kernel runs one fused lane-dense QKV matmul, and
    # fold the 1/sqrt(Dh) attention scale into the q columns (q bias is zero, so
    # there is nothing to fold there).
    w_qkv = jax.random.normal(ks[5], (layers, 3 * W, W), jnp.float32) * attn_std
    w_qkv = jnp.transpose(w_qkv, (0, 2, 1))                              # (L, W, 3W)
    qcol_scale = jnp.concatenate([jnp.full((W,), Dh ** -0.5, jnp.float32),
                                  jnp.ones((2 * W,), jnp.float32)])
    w_qkv = w_qkv * qcol_scale[None, None, :]

    # out_proj: PyTorch weight (W, W), y = a @ W.T + b -> store transpose (in, out)
    w_out = jax.random.normal(ks[6], (layers, W, W), jnp.float32) * proj_std
    w_out = jnp.transpose(w_out, (0, 2, 1))                              # (L, W, W)

    w_fc = jnp.transpose(jax.random.normal(ks[7], (layers, 4 * W, W), jnp.float32)
                         * fc_std, (0, 2, 1))                            # (L, W, 4W)
    w_pj = jnp.transpose(jax.random.normal(ks[8], (layers, W, 4 * W), jnp.float32)
                         * proj_std, (0, 2, 1))                          # (L, 4W, W)

    p["stacked"] = {
        "ln1_w": jnp.ones((layers, 1, W), jnp.float32),
        "ln1_b": jnp.zeros((layers, 1, W), jnp.float32),
        "w_qkv": w_qkv.astype(jnp.bfloat16),
        "b_qkv": jnp.zeros((layers, 1, 3 * W), jnp.float32),
        "w_out": w_out.astype(jnp.bfloat16),
        "b_out": jnp.zeros((layers, 1, W), jnp.float32),
        "ln2_w": jnp.ones((layers, 1, W), jnp.float32),
        "ln2_b": jnp.zeros((layers, 1, W), jnp.float32),
        "w_fc": w_fc.astype(jnp.bfloat16),
        "b_fc": jnp.zeros((layers, 1, 4 * W), jnp.float32),
        "w_proj": w_pj.astype(jnp.bfloat16),
        "b_proj": jnp.zeros((layers, 1, W), jnp.float32),
    }
    return p


def encode_text(text, params, n_head):
    # token embedding gather + positional embedding add (XLA glue)
    x = params["token_embedding"][text]                        # (B, L, W)
    x = x + params["positional_embedding"][None]
    # fused transformer: one pallas_call, activations resident across layers
    x = text_transformer(x, params["attn_mask"], params["stacked"], n_head)
    # gather only the EOT token rows (text.argmax(dim=-1)) -> (B, W)
    B = text.shape[0]
    eot = jnp.argmax(text, axis=-1)
    return x[jnp.arange(B), eot]


def encode_image(image, params):
    y = conv1x1(image, params["conv1_w"])                      # Pallas 1x1 conv
    # TODO(synk): CLIP.encode_image is not defined in the reference module (forward
    # would raise AttributeError); stand-in = conv1 + global-average-pool +
    # deterministic linear projection to embed_dim so the full forward() executes.
    pooled = jnp.mean(y, axis=(2, 3))                          # (B, 3)
    return pooled @ params["img_proj"]                         # (B, E)


def clip_forward(image, text, params, n_head):
    image_features = encode_image(image, params)               # (B, E)
    x_eot = encode_text(text, params, n_head)                  # (B, W) EOT rows
    # fused: ln_final + text_projection + normalization + logit matmul
    logits_per_image = text_head_and_logits(x_eot, image_features, params)
    # logits_per_text is exactly the transpose: do it as XLA glue rather than a
    # second masked in-kernel writeback.
    return logits_per_image, logits_per_image.T


# --------------------------------- main --------------------------------------
if __name__ == "__main__":
    embed_dim = 32
    context_length = 8
    vocab_size = 64
    transformer_width = 32
    transformer_heads = 4
    transformer_layers = 2

    key = jax.random.PRNGKey(0)
    pkey, ikey, tkey = jax.random.split(key, 3)
    params = init_params(pkey, embed_dim, context_length, vocab_size,
                         transformer_width, transformer_heads, transformer_layers)

    image = jax.random.normal(ikey, (2, 3, 16, 16), jnp.float32)   # NCHW
    text = jax.random.randint(tkey, (2, context_length), 0, vocab_size, jnp.int32)

    fwd = jax.jit(functools.partial(clip_forward, n_head=transformer_heads))
    logits_per_image, logits_per_text = fwd(image, text, params)
    jax.block_until_ready((logits_per_image, logits_per_text))

    assert logits_per_image.shape == (2, 2) and logits_per_text.shape == (2, 2)
    assert bool(jnp.all(jnp.isfinite(logits_per_image)))
    assert bool(jnp.allclose(logits_per_text, logits_per_image.T, atol=1e-5))
    print("KERNEL_OK")
</pallas_src>

<mosaic_0001>
module attributes {stable_mosaic.version = 11 : i64} {
  func.func @_conv1x1_kernel(%arg0: memref<3x512xbf16, #tpu.memory_space<vmem>>, %arg1: memref<3x3xbf16, #tpu.memory_space<vmem>>, %arg2: memref<3x512xf32, #tpu.memory_space<vmem>>) attributes {dimension_semantics = [], scalar_prefetch = 0 : i64, scratch_operands = 0 : i64, tpu.core_type = #tpu.core_type<tc>} {
    %c0 = arith.constant 0 : index
    %c0_0 = arith.constant 0 : index
    %0 = vector.load %arg1[%c0, %c0_0] : memref<3x3xbf16, #tpu.memory_space<vmem>>, vector<3x3xbf16>
    %c0_1 = arith.constant 0 : index
    %c0_2 = arith.constant 0 : index
    %1 = vector.load %arg0[%c0_1, %c0_2] : memref<3x512xbf16, #tpu.memory_space<vmem>>, vector<3x512xbf16>
    %cst = arith.constant dense<0.000000e+00> : vector<3x512xf32>
    %2 = tpu.matmul %0, %1, %cst {dimension_numbers = #tpu.dot_dimension_numbers<[1], [0], [0], [1], [0, 0, 1, 1], [], []>} : vector<3x3xbf16>, vector<3x512xbf16>, vector<3x512xf32> -> vector<3x512xf32>
    %c0_3 = arith.constant 0 : index
    %c0_4 = arith.constant 0 : index
    %3 = vector.load %arg2[%c0_3, %c0_4] : memref<3x512xf32, #tpu.memory_space<vmem>>, vector<3x512xf32>
    tpu.vector_store %arg2[%c0_3, %c0_4], %2 {strides = array<i32>} : memref<3x512xf32, #tpu.memory_space<vmem>>, vector<3x512xf32>,
    return
  }
}

module attributes {stable_mosaic.version = 11 : i64} {
  func.func @_transformer_kernel(%arg0: i32, %arg1: i32, %arg2: memref<2x8x32xf32, #tpu.memory_space<vmem>>, %arg3: memref<8x8xf32, #tpu.memory_space<vmem>>, %arg4: memref<1x1x32xf32, #tpu.memory_space<vmem>>, %arg5: memref<1x1x32xf32, #tpu.memory_space<vmem>>, %arg6: memref<1x32x96xbf16, #tpu.memory_space<vmem>>, %arg7: memref<1x1x96xf32, #tpu.memory_space<vmem>>, %arg8: memref<1x32x32xbf16, #tpu.memory_space<vmem>>, %arg9: memref<1x1x32xf32, #tpu.memory_space<vmem>>, %arg10: memref<1x1x32xf32, #tpu.memory_space<vmem>>, %arg11: memref<1x1x32xf32, #tpu.memory_space<vmem>>, %arg12: memref<1x32x128xbf16, #tpu.memory_space<vmem>>, %arg13: memref<1x1x128xf32, #tpu.memory_space<vmem>>, %arg14: memref<1x128x32xbf16, #tpu.memory_space<vmem>>, %arg15: memref<1x1x32xf32, #tpu.memory_space<vmem>>, %arg16: memref<2x8x32xf32, #tpu.memory_space<vmem>>) attributes {dimension_semantics = [#tpu.dimension_semantics<parallel>, #tpu.dimension_semantics<arbitrary>], iteration_bounds = array<i64: 1, 2>, scalar_prefetch = 0 : i64, scratch_operands = 0 : i64, tpu.core_type = #tpu.core_type<tc>, window_params = [{transform_indices = @transform_0, window_bounds = array<i64: 2, 8, 32>}, {pipeline_mode = #tpu.pipeline_mode<synchronous>, transform_indices = @transform_1, window_bounds = array<i64: 8, 8>}, {transform_indices = @transform_2, window_bounds = array<i64: 1, 1, 32>}, {transform_indices = @transform_3, window_bounds = array<i64: 1, 1, 32>}, {transform_indices = @transform_4, window_bounds = array<i64: 1, 32, 96>}, {transform_indices = @transform_5, window_bounds = array<i64: 1, 1, 96>}, {transform_indices = @transform_6, window_bounds = array<i64: 1, 32, 32>}, {transform_indices = @transform_7, window_bounds = array<i64: 1, 1, 32>}, {transform_indices = @transform_8, window_bounds = array<i64: 1, 1, 32>}, {transform_indices = @transform_9, window_bounds = array<i64: 1, 1, 32>}, {transform_indices = @transform_10, window_bounds = array<i64: 1, 32, 128>}, {transform_indices = @transform_11, window_bounds = array<i64: 1, 1, 128>}, {transform_indices = @transform_12, window_bounds = array<i64: 1, 128, 32>}, {transform_indices = @transform_13, window_bounds = array<i64: 1, 1, 32>}, {transform_indices = @transform_14, window_bounds = array<i64: 2, 8, 32>}]} {
    %c0_i32 = arith.constant 0 : i32
    %0 = arith.cmpi eq, %arg1, %c0_i32 : i32
    %1 = arith.extui %0 : i1 to i32
    %c0_i32_0 = arith.constant 0 : i32
    %2 = arith.cmpi ne, %1, %c0_i32_0 : i32
    scf.if %2 {
      %c0_75 = arith.constant 0 : index
      %c0_76 = arith.constant 0 : index
      %c0_77 = arith.constant 0 : index
      %192 = vector.load %arg2[%c0_75, %c0_76, %c0_77] : memref<2x8x32xf32, #tpu.memory_space<vmem>>, vector<2x8x32xf32>
      %c0_78 = arith.constant 0 : index
      %c0_79 = arith.constant 0 : index
      %c0_80 = arith.constant 0 : index
      %193 = vector.load %arg16[%c0_78, %c0_79, %c0_80] : memref<2x8x32xf32, #tpu.memory_space<vmem>>, vector<2x8x32xf32>
      tpu.vector_store %arg16[%c0_78, %c0_79, %c0_80], %192 {strides = array<i32>} : memref<2x8x32xf32, #tpu.memory_space<vmem>>, vector<2x8x32xf32>,
    } else {
    }
    %c0 = arith.constant 0 : index
    %c0_1 = arith.constant 0 : index
    %c0_2 = arith.constant 0 : index
    %3 = vector.load %arg16[%c0, %c0_1, %c0_2] : memref<2x8x32xf32, #tpu.memory_space<vmem>>, vector<2x8x32xf32>
    %c0_3 = arith.constant 0 : index
    %c0_4 = arith.constant 0 : index
    %c0_5 = arith.constant 0 : index
    %4 = vector.load %arg4[%c0_3, %c0_4, %c0_5] : memref<1x1x32xf32, #tpu.memory_space<vmem>>, vector<1x1x32xf32>
    %5 = vector.shape_cast %4 : vector<1x1x32xf32> to vector<1x32xf32>
    %c0_6 = arith.constant 0 : index
    %c0_7 = arith.constant 0 : index
    %c0_8 = arith.constant 0 : index
    %6 = vector.load %arg5[%c0_6, %c0_7, %c0_8] : memref<1x1x32xf32, #tpu.memory_space<vmem>>, vector<1x1x32xf32>
    %7 = vector.shape_cast %6 : vector<1x1x32xf32> to vector<1x32xf32>
    %cst = arith.constant dense<0.000000e+00> : vector<2x8xf32>
    %8 = vector.multi_reduction <add>, %3, %cst [2] : vector<2x8x32xf32> to vector<2x8xf32>
    %9 = vector.shape_cast %8 : vector<2x8xf32> to vector<2x8x1xf32>
    %cst_9 = arith.constant 3.200000e+01 : f32
    %10 = vector.broadcast %cst_9 : f32 to vector<2x8x1xf32>
    %11 = arith.divf %9, %10 : vector<2x8x1xf32>
    %12 = vector.broadcast %11 : vector<2x8x1xf32> to vector<2x8x32xf32>
    %13 = arith.subf %3, %12 : vector<2x8x32xf32>
    %14 = arith.mulf %13, %13 : vector<2x8x32xf32>
    %cst_10 = arith.constant dense<0.000000e+00> : vector<2x8xf32>
    %15 = vector.multi_reduction <add>, %14, %cst_10 [2] : vector<2x8x32xf32> to vector<2x8xf32>
    %16 = vector.shape_cast %15 : vector<2x8xf32> to vector<2x8x1xf32>
    %cst_11 = arith.constant 3.200000e+01 : f32
    %17 = vector.broadcast %cst_11 : f32 to vector<2x8x1xf32>
    %18 = arith.divf %16, %17 : vector<2x8x1xf32>
    %cst_12 = arith.constant 9.99999974E-6 : f32
    %19 = vector.broadcast %cst_12 : f32 to vector<2x8x1xf32>
    %20 = arith.addf %18, %19 : vector<2x8x1xf32>
    %21 = math.rsqrt %20 : vector<2x8x1xf32>
    %22 = vector.broadcast %21 : vector<2x8x1xf32> to vector<2x8x32xf32>
    %23 = arith.mulf %13, %22 : vector<2x8x32xf32>
    %24 = vector.shape_cast %5 : vector<1x32xf32> to vector<1x1x32xf32>
    %25 = vector.broadcast %24 : vector<1x1x32xf32> to vector<2x8x32xf32>
    %26 = arith.mulf %23, %25 : vector<2x8x32xf32>
    %27 = vector.shape_cast %7 : vector<1x32xf32> to vector<1x1x32xf32>
    %28 = vector.broadcast %27 : vector<1x1x32xf32> to vector<2x8x32xf32>
    %29 = arith.addf %26, %28 : vector<2x8x32xf32>
    %30 = vector.shape_cast %29 : vector<2x8x32xf32> to vector<16x32xf32>
    %31 = arith.truncf %30 : vector<16x32xf32> to vector<16x32xbf16>
    %c0_13 = arith.constant 0 : index
    %c0_14 = arith.constant 0 : index
    %c0_15 = arith.constant 0 : index
    %32 = vector.load %arg6[%c0_13, %c0_14, %c0_15] : memref<1x32x96xbf16, #tpu.memory_space<vmem>>, vector<1x32x96xbf16>
    %33 = vector.shape_cast %32 : vector<1x32x96xbf16> to vector<32x96xbf16>
    %cst_16 = arith.constant dense<0.000000e+00> : vector<16x96xf32>
    %34 = tpu.matmul %31, %33, %cst_16 {dimension_numbers = #tpu.dot_dimension_numbers<[1], [0], [0], [1], [0, 0, 1, 1], [], []>} : vector<16x32xbf16>, vector<32x96xbf16>, vector<16x96xf32> -> vector<16x96xf32>
    %c0_17 = arith.constant 0 : index
    %c0_18 = arith.constant 0 : index
    %c0_19 = arith.constant 0 : index
    %35 = vector.load %arg7[%c0_17, %c0_18, %c0_19] : memref<1x1x96xf32, #tpu.memory_space<vmem>>, vector<1x1x96xf32>
    %36 = vector.shape_cast %35 : vector<1x1x96xf32> to vector<1x96xf32>
    %37 = vector.broadcast %36 : vector<1x96xf32> to vector<16x96xf32>
    %38 = arith.addf %34, %37 : vector<16x96xf32>
    %39 = arith.truncf %38 : vector<16x96xf32> to vector<16x96xbf16>
    %c0_20 = arith.constant 0 : index
    %c0_21 = arith.constant 0 : index
    %40 = vector.load %arg3[%c0_20, %c0_21] : memref<8x8xf32, #tpu.memory_space<vmem>>, vector<8x8xf32>
    %41 = vector.shape_cast %40 : vector<8x8xf32> to vector<1x8x8xf32>
    %42 = vector.extract_strided_slice %39 {offsets = [0, 0], sizes = [16, 8], strides = [1, 1]} : vector<16x96xbf16> to vector<16x8xbf16>
    %43 = vector.shape_cast %42 : vector<16x8xbf16> to vector<2x8x8xbf16>
    %44 = vector.extract_strided_slice %39 {offsets = [0, 32], sizes = [16, 8], strides = [1, 1]} : vector<16x96xbf16> to vector<16x8xbf16>
    %45 = vector.shape_cast %44 : vector<16x8xbf16> to vector<2x8x8xbf16>
    %46 = vector.extract_strided_slice %39 {offsets = [0, 64], sizes = [16, 8], strides = [1, 1]} : vector<16x96xbf16> to vector<16x8xbf16>
    %47 = vector.shape_cast %46 : vector<16x8xbf16> to vector<2x8x8xbf16>
    %cst_22 = arith.constant dense<0.000000e+00> : vector<2x8x8xf32>
    %48 = tpu.matmul %43, %45, %cst_22 {dimension_numbers = #tpu.dot_dimension_numbers<[2], [2], [1], [1], [0, 0, 0, 1, 1, 1], [0], [0]>} : vector<2x8x8xbf16>, vector<2x8x8xbf16>, vector<2x8x8xf32> -> vector<2x8x8xf32>
    %49 = vector.broadcast %41 : vector<1x8x8xf32> to vector<2x8x8xf32>
    %50 = arith.addf %48, %49 : vector<2x8x8xf32>
    %cst_23 = arith.constant dense<0xFF800000> : vector<2x8xf32>
    %51 = vector.multi_reduction <maximumf>, %50, %cst_23 [2] : vector<2x8x8xf32> to vector<2x8xf32>
    %52 = vector.shape_cast %51 : vector<2x8xf32> to vector<2x8x1xf32>
    %53 = vector.broadcast %52 : vector<2x8x1xf32> to vector<2x8x8xf32>
    %54 = arith.subf %50, %53 : vector<2x8x8xf32>
    %55 = math.exp %54 : vector<2x8x8xf32>
    %cst_24 = arith.constant dense<0.000000e+00> : vector<2x8xf32>
    %56 = vector.multi_reduction <add>, %55, %cst_24 [2] : vector<2x8x8xf32> to vector<2x8xf32>
    %57 = vector.shape_cast %56 : vector<2x8xf32> to vector<2x8x1xf32>
    %58 = tpu.reciprocal %57 {approx = true} : vector<2x8x1xf32> -> vector<2x8x1xf32>
    %59 = vector.broadcast %58 : vector<2x8x1xf32> to vector<2x8x8xf32>
    %60 = arith.mulf %55, %59 : vector<2x8x8xf32>
    %61 = arith.truncf %60 : vector<2x8x8xf32> to vector<2x8x8xbf16>
    %cst_25 = arith.constant dense<0.000000e+00> : vector<2x8x8xf32>
    %62 = tpu.matmul %61, %47, %cst_25 {dimension_numbers = #tpu.dot_dimension_numbers<[2], [1], [1], [2], [0, 0, 0, 1, 1, 2], [0], [0]>} : vector<2x8x8xbf16>, vector<2x8x8xbf16>, vector<2x8x8xf32> -> vector<2x8x8xf32>
    %63 = vector.extract_strided_slice %39 {offsets = [0, 8], sizes = [16, 8], strides = [1, 1]} : vector<16x96xbf16> to vector<16x8xbf16>
    %64 = vector.shape_cast %63 : vector<16x8xbf16> to vector<2x8x8xbf16>
    %65 = vector.extract_strided_slice %39 {offsets = [0, 40], sizes = [16, 8], strides = [1, 1]} : vector<16x96xbf16> to vector<16x8xbf16>
    %66 = vector.shape_cast %65 : vector<16x8xbf16> to vector<2x8x8xbf16>
    %67 = vector.extract_strided_slice %39 {offsets = [0, 72], sizes = [16, 8], strides = [1, 1]} : vector<16x96xbf16> to vector<16x8xbf16>
    %68 = vector.shape_cast %67 : vector<16x8xbf16> to vector<2x8x8xbf16>
    %cst_26 = arith.constant dense<0.000000e+00> : vector<2x8x8xf32>
    %69 = tpu.matmul %64, %66, %cst_26 {dimension_numbers = #tpu.dot_dimension_numbers<[2], [2], [1], [1], [0, 0, 0, 1, 1, 1], [0], [0]>} : vector<2x8x8xbf16>, vector<2x8x8xbf16>, vector<2x8x8xf32> -> vector<2x8x8xf32>
    %70 = vector.broadcast %41 : vector<1x8x8xf32> to vector<2x8x8xf32>
    %71 = arith.addf %69, %70 : vector<2x8x8xf32>
    %cst_27 = arith.constant dense<0xFF800000> : vector<2x8xf32>
    %72 = vector.multi_reduction <maximumf>, %71, %cst_27 [2] : vector<2x8x8xf32> to vector<2x8xf32>
    %73 = vector.shape_cast %72 : vector<2x8xf32> to vector<2x8x1xf32>
    %74 = vector.broadcast %73 : vector<2x8x1xf32> to vector<2x8x8xf32>
    %75 = arith.subf %71, %74 : vector<2x8x8xf32>
    %76 = math.exp %75 : vector<2x8x8xf32>
    %cst_28 = arith.constant dense<0.000000e+00> : vector<2x8xf32>
    %77 = vector.multi_reduction <add>, %76, %cst_28 [2] : vector<2x8x8xf32> to vector<2x8xf32>
    %78 = vector.shape_cast %77 : vector<2x8xf32> to vector<2x8x1xf32>
    %79 = tpu.reciprocal %78 {approx = true} : vector<2x8x1xf32> -> vector<2x8x1xf32>
    %80 = vector.broadcast %79 : vector<2x8x1xf32> to vector<2x8x8xf32>
    %81 = arith.mulf %76, %80 : vector<2x8x8xf32>
    %82 = arith.truncf %81 : vector<2x8x8xf32> to vector<2x8x8xbf16>
    %cst_29 = arith.constant dense<0.000000e+00> : vector<2x8x8xf32>
    %83 = tpu.matmul %82, %68, %cst_29 {dimension_numbers = #tpu.dot_dimension_numbers<[2], [1], [1], [2], [0, 0, 0, 1, 1, 2], [0], [0]>} : vector<2x8x8xbf16>, vector<2x8x8xbf16>, vector<2x8x8xf32> -> vector<2x8x8xf32>
    %84 = vector.extract_strided_slice %39 {offsets = [0, 16], sizes = [16, 8], strides = [1, 1]} : vector<16x96xbf16> to vector<16x8xbf16>
    %85 = vector.shape_cast %84 : vector<16x8xbf16> to vector<2x8x8xbf16>
    %86 = vector.extract_strided_slice %39 {offsets = [0, 48], sizes = [16, 8], strides = [1, 1]} : vector<16x96xbf16> to vector<16x8xbf16>
    %87 = vector.shape_cast %86 : vector<16x8xbf16> to vector<2x8x8xbf16>
    %88 = vector.extract_strided_slice %39 {offsets = [0, 80], sizes = [16, 8], strides = [1, 1]} : vector<16x96xbf16> to vector<16x8xbf16>
    %89 = vector.shape_cast %88 : vector<16x8xbf16> to vector<2x8x8xbf16>
    %cst_30 = arith.constant dense<0.000000e+00> : vector<2x8x8xf32>
    %90 = tpu.matmul %85, %87, %cst_30 {dimension_numbers = #tpu.dot_dimension_numbers<[2], [2], [1], [1], [0, 0, 0, 1, 1, 1], [0], [0]>} : vector<2x8x8xbf16>, vector<2x8x8xbf16>, vector<2x8x8xf32> -> vector<2x8x8xf32>
    %91 = vector.broadcast %41 : vector<1x8x8xf32> to vector<2x8x8xf32>
    %92 = arith.addf %90, %91 : vector<2x8x8xf32>
    %cst_31 = arith.constant dense<0xFF800000> : vector<2x8xf32>
    %93 = vector.multi_reduction <maximumf>, %92, %cst_31 [2] : vector<2x8x8xf32> to vector<2x8xf32>
    %94 = vector.shape_cast %93 : vector<2x8xf32> to vector<2x8x1xf32>
    %95 = vector.broadcast %94 : vector<2x8x1xf32> to vector<2x8x8xf32>
    %96 = arith.subf %92, %95 : vector<2x8x8xf32>
    %97 = math.exp %96 : vector<2x8x8xf32>
    %cst_32 = arith.constant dense<0.000000e+00> : vector<2x8xf32>
    %98 = vector.multi_reduction <add>, %97, %cst_32 [2] : vector<2x8x8xf32> to vector<2x8xf32>
    %99 = vector.shape_cast %98 : vector<2x8xf32> to vector<2x8x1xf32>
    %100 = tpu.reciprocal %99 {approx = true} : vector<2x8x1xf32> -> vector<2x8x1xf32>
    %101 = vector.broadcast %100 : vector<2x8x1xf32> to vector<2x8x8xf32>
    %102 = arith.mulf %97, %101 : vector<2x8x8xf32>
    %103 = arith.truncf %102 : vector<2x8x8xf32> to vector<2x8x8xbf16>
    %cst_33 = arith.constant dense<0.000000e+00> : vector<2x8x8xf32>
    %104 = tpu.matmul %103, %89, %cst_33 {dimension_numbers = #tpu.dot_dimension_numbers<[2], [1], [1], [2], [0, 0, 0, 1, 1, 2], [0], [0]>} : vector<2x8x8xbf16>, vector<2x8x8xbf16>, vector<2x8x8xf32> -> vector<2x8x8xf32>
    %105 = vector.extract_strided_slice %39 {offsets = [0, 24], sizes = [16, 8], strides = [1, 1]} : vector<16x96xbf16> to vector<16x8xbf16>
    %106 = vector.shape_cast %105 : vector<16x8xbf16> to vector<2x8x8xbf16>
    %107 = vector.extract_strided_slice %39 {offsets = [0, 56], sizes = [16, 8], strides = [1, 1]} : vector<16x96xbf16> to vector<16x8xbf16>
    %108 = vector.shape_cast %107 : vector<16x8xbf16> to vector<2x8x8xbf16>
    %109 = vector.extract_strided_slice %39 {offsets = [0, 88], sizes = [16, 8], strides = [1, 1]} : vector<16x96xbf16> to vector<16x8xbf16>
    %110 = vector.shape_cast %109 : vector<16x8xbf16> to vector<2x8x8xbf16>
    %cst_34 = arith.constant dense<0.000000e+00> : vector<2x8x8xf32>
    %111 = tpu.matmul %106, %108, %cst_34 {dimension_numbers = #tpu.dot_dimension_numbers<[2], [2], [1], [1], [0, 0, 0, 1, 1, 1], [0], [0]>} : vector<2x8x8xbf16>, vector<2x8x8xbf16>, vector<2x8x8xf32> -> vector<2x8x8xf32>
    %112 = vector.broadcast %41 : vector<1x8x8xf32> to vector<2x8x8xf32>
    %113 = arith.addf %111, %112 : vector<2x8x8xf32>
    %cst_35 = arith.constant dense<0xFF800000> : vector<2x8xf32>
    %114 = vector.multi_reduction <maximumf>, %113, %cst_35 [2] : vector<2x8x8xf32> to vector<2x8xf32>
    %115 = vector.shape_cast %114 : vector<2x8xf32> to vector<2x8x1xf32>
    %116 = vector.broadcast %115 : vector<2x8x1xf32> to vector<2x8x8xf32>
    %117 = arith.subf %113, %116 : vector<2x8x8xf32>
    %118 = math.exp %117 : vector<2x8x8xf32>
    %cst_36 = arith.constant dense<0.000000e+00> : vector<2x8xf32>
    %119 = vector.multi_reduction <add>, %118, %cst_36 [2] : vector<2x8x8xf32> to vector<2x8xf32>
    %120 = vector.shape_cast %119 : vector<2x8xf32> to vector<2x8x1xf32>
    %121 = tpu.reciprocal %120 {approx = true} : vector<2x8x1xf32> -> vector<2x8x1xf32>
    %122 = vector.broadcast %121 : vector<2x8x1xf32> to vector<2x8x8xf32>
    %123 = arith.mulf %118, %122 : vector<2x8x8xf32>
    %124 = arith.truncf %123 : vector<2x8x8xf32> to vector<2x8x8xbf16>
    %cst_37 = arith.constant dense<0.000000e+00> : vector<2x8x8xf32>
    %125 = tpu.matmul %124, %110, %cst_37 {dimension_numbers = #tpu.dot_dimension_numbers<[2], [1], [1], [2], [0, 0, 0, 1, 1, 2], [0], [0]>} : vector<2x8x8xbf16>, vector<2x8x8xbf16>, vector<2x8x8xf32> -> vector<2x8x8xf32>
    %126 = tpu.concatenate %62, %83, %104, %125 in 2 : vector<2x8x8xf32>, vector<2x8x8xf32>, vector<2x8x8xf32>, vector<2x8x8xf32> -> vector<2x8x32xf32>
    %127 = vector.shape_cast %126 : vector<2x8x32xf32> to vector<16x32xf32>
    %128 = arith.truncf %127 : vector<16x32xf32> to vector<16x32xbf16>
    %c0_38 = arith.constant 0 : index
    %c0_39 = arith.constant 0 : index
    %c0_40 = arith.constant 0 : index
    %129 = vector.load %arg8[%c0_38, %c0_39, %c0_40] : memref<1x32x32xbf16, #tpu.memory_space<vmem>>, vector<1x32x32xbf16>
    %130 = vector.shape_cast %129 : vector<1x32x32xbf16> to vector<32x32xbf16>
    %cst_41 = arith.constant dense<0.000000e+00> : vector<16x32xf32>
    %131 = tpu.matmul %128, %130, %cst_41 {dimension_numbers = #tpu.dot_dimension_numbers<[1], [0], [0], [1], [0, 0, 1, 1], [], []>} : vector<16x32xbf16>, vector<32x32xbf16>, vector<16x32xf32> -> vector<16x32xf32>
    %c0_42 = arith.constant 0 : index
    %c0_43 = arith.constant 0 : index
    %c0_44 = arith.constant 0 : index
    %132 = vector.load %arg9[%c0_42, %c0_43, %c0_44] : memref<1x1x32xf32, #tpu.memory_space<vmem>>, vector<1x1x32xf32>
    %133 = vector.shape_cast %132 : vector<1x1x32xf32> to vector<1x32xf32>
    %134 = vector.broadcast %133 : vector<1x32xf32> to vector<16x32xf32>
    %135 = arith.addf %131, %134 : vector<16x32xf32>
    %136 = vector.shape_cast %135 : vector<16x32xf32> to vector<2x8x32xf32>
    %137 = arith.addf %3, %136 : vector<2x8x32xf32>
    %c0_45 = arith.constant 0 : index
    %c0_46 = arith.constant 0 : index
    %c0_47 = arith.constant 0 : index
    %138 = vector.load %arg10[%c0_45, %c0_46, %c0_47] : memref<1x1x32xf32, #tpu.memory_space<vmem>>, vector<1x1x32xf32>
    %139 = vector.shape_cast %138 : vector<1x1x32xf32> to vector<1x32xf32>
    %c0_48 = arith.constant 0 : index
    %c0_49 = arith.constant 0 : index
    %c0_50 = arith.constant 0 : index
    %140 = vector.load %arg11[%c0_48, %c0_49, %c0_50] : memref<1x1x32xf32, #tpu.memory_space<vmem>>, vector<1x1x32xf32>
    %141 = vector.shape_cast %140 : vector<1x1x32xf32> to vector<1x32xf32>
    %cst_51 = arith.constant dense<0.000000e+00> : vector<2x8xf32>
    %142 = vector.multi_reduction <add>, %137, %cst_51 [2] : vector<2x8x32xf32> to vector<2x8xf32>
    %143 = vector.shape_cast %142 : vector<2x8xf32> to vector<2x8x1xf32>
    %cst_52 = arith.constant 3.200000e+01 : f32
    %144 = vector.broadcast %cst_52 : f32 to vector<2x8x1xf32>
    %145 = arith.divf %143, %144 : vector<2x8x1xf32>
    %146 = vector.broadcast %145 : vector<2x8x1xf32> to vector<2x8x32xf32>
    %147 = arith.subf %137, %146 : vector<2x8x32xf32>
    %148 = arith.mulf %147, %147 : vector<2x8x32xf32>
    %cst_53 = arith.constant dense<0.000000e+00> : vector<2x8xf32>
    %149 = vector.multi_reduction <add>, %148, %cst_53 [2] : vector<2x8x32xf32> to vector<2x8xf32>
    %150 = vector.shape_cast %149 : vector<2x8xf32> to vector<2x8x1xf32>
    %cst_54 = arith.constant 3.200000e+01 : f32
    %151 = vector.broadcast %cst_54 : f32 to vector<2x8x1xf32>
    %152 = arith.divf %150, %151 : vector<2x8x1xf32>
    %cst_55 = arith.constant 9.99999974E-6 : f32
    %153 = vector.broadcast %cst_55 : f32 to vector<2x8x1xf32>
    %154 = arith.addf %152, %153 : vector<2x8x1xf32>
    %155 = math.rsqrt %154 : vector<2x8x1xf32>
    %156 = vector.broadcast %155 : vector<2x8x1xf32> to vector<2x8x32xf32>
    %157 = arith.mulf %147, %156 : vector<2x8x32xf32>
    %158 = vector.shape_cast %139 : vector<1x32xf32> to vector<1x1x32xf32>
    %159 = vector.broadcast %158 : vector<1x1x32xf32> to vector<2x8x32xf32>
    %160 = arith.mulf %157, %159 : vector<2x8x32xf32>
    %161 = vector.shape_cast %141 : vector<1x32xf32> to vector<1x1x32xf32>
    %162 = vector.broadcast %161 : vector<1x1x32xf32> to vector<2x8x32xf32>
    %163 = arith.addf %160, %162 : vector<2x8x32xf32>
    %164 = vector.shape_cast %163 : vector<2x8x32xf32> to vector<16x32xf32>
    %165 = arith.truncf %164 : vector<16x32xf32> to vector<16x32xbf16>
    %c0_56 = arith.constant 0 : index
    %c0_57 = arith.constant 0 : index
    %c0_58 = arith.constant 0 : index
    %166 = vector.load %arg12[%c0_56, %c0_57, %c0_58] : memref<1x32x128xbf16, #tpu.memory_space<vmem>>, vector<1x32x128xbf16>
    %167 = vector.shape_cast %166 : vector<1x32x128xbf16> to vector<32x128xbf16>
    %cst_59 = arith.constant dense<0.000000e+00> : vector<16x128xf32>
    %168 = tpu.matmul %165, %167, %cst_59 {dimension_numbers = #tpu.dot_dimension_numbers<[1], [0], [0], [1], [0, 0, 1, 1], [], []>} : vector<16x32xbf16>, vector<32x128xbf16>, vector<16x128xf32> -> vector<16x128xf32>
    %c0_60 = arith.constant 0 : index
    %c0_61 = arith.constant 0 : index
    %c0_62 = arith.constant 0 : index
    %169 = vector.load %arg13[%c0_60, %c0_61, %c0_62] : memref<1x1x128xf32, #tpu.memory_space<vmem>>, vector<1x1x128xf32>
    %170 = vector.shape_cast %169 : vector<1x1x128xf32> to vector<1x128xf32>
    %171 = vector.broadcast %170 : vector<1x128xf32> to vector<16x128xf32>
    %172 = arith.addf %168, %171 : vector<16x128xf32>
    %cst_63 = arith.constant 1.702000e+00 : f32
    %173 = vector.broadcast %cst_63 : f32 to vector<16x128xf32>
    %174 = arith.mulf %173, %172 : vector<16x128xf32>
    %175 = arith.negf %174 : vector<16x128xf32>
    %176 = math.exp %175 : vector<16x128xf32>
    %cst_64 = arith.constant 1.000000e+00 : f32
    %177 = vector.broadcast %cst_64 : f32 to vector<16x128xf32>
    %178 = arith.addf %177, %176 : vector<16x128xf32>
    %179 = arith.divf %177, %178 : vector<16x128xf32>
    %180 = arith.mulf %172, %179 : vector<16x128xf32>
    %181 = arith.truncf %180 : vector<16x128xf32> to vector<16x128xbf16>
    %c0_65 = arith.constant 0 : index
    %c0_66 = arith.constant 0 : index
    %c0_67 = arith.constant 0 : index
    %182 = vector.load %arg14[%c0_65, %c0_66, %c0_67] : memref<1x128x32xbf16, #tpu.memory_space<vmem>>, vector<1x128x32xbf16>
    %183 = vector.shape_cast %182 : vector<1x128x32xbf16> to vector<128x32xbf16>
    %cst_68 = arith.constant dense<0.000000e+00> : vector<16x32xf32>
    %184 = tpu.matmul %181, %183, %cst_68 {dimension_numbers = #tpu.dot_dimension_numbers<[1], [0], [0], [1], [0, 0, 1, 1], [], []>} : vector<16x128xbf16>, vector<128x32xbf16>, vector<16x32xf32> -> vector<16x32xf32>
    %c0_69 = arith.constant 0 : index
    %c0_70 = arith.constant 0 : index
    %c0_71 = arith.constant 0 : index
    %185 = vector.load %arg15[%c0_69, %c0_70, %c0_71] : memref<1x1x32xf32, #tpu.memory_space<vmem>>, vector<1x1x32xf32>
    %186 = vector.shape_cast %185 : vector<1x1x32xf32> to vector<1x32xf32>
    %187 = vector.broadcast %186 : vector<1x32xf32> to vector<16x32xf32>
    %188 = arith.addf %184, %187 : vector<16x32xf32>
    %189 = vector.shape_cast %188 : vector<16x32xf32> to vector<2x8x32xf32>
    %190 = arith.addf %137, %189 : vector<2x8x32xf32>
    %c0_72 = arith.constant 0 : index
    %c0_73 = arith.constant 0 : index
    %c0_74 = arith.constant 0 : index
    %191 = vector.load %arg16[%c0_72, %c0_73, %c0_74] : memref<2x8x32xf32, #tpu.memory_space<vmem>>, vector<2x8x32xf32>
    tpu.vector_store %arg16[%c0_72, %c0_73, %c0_74], %190 {strides = array<i32>} : memref<2x8x32xf32, #tpu.memory_space<vmem>>, vector<2x8x32xf32>,
    return
  }
  func.func @transform_0(%arg0: i32, %arg1: i32) -> (i32, i32, i32) {
    %c0_i32 = arith.constant 0 : i32
    %c0_i32_0 = arith.constant 0 : i32
    %c0_i32_1 = arith.constant 0 : i32
    return %arg0, %c0_i32, %c0_i32_0 : i32, i32, i32
  }
  func.func @transform_1(%arg0: i32, %arg1: i32) -> (i32, i32) {
    %c0_i32 = arith.constant 0 : i32
    %c0_i32_0 = arith.constant 0 : i32
    %c0_i32_1 = arith.constant 0 : i32
    return %c0_i32, %c0_i32_0 : i32, i32
  }
  func.func @transform_2(%arg0: i32, %arg1: i32) -> (i32, i32, i32) {
    %c0_i32 = arith.constant 0 : i32
    %c0_i32_0 = arith.constant 0 : i32
    %c0_i32_1 = arith.constant 0 : i32
    return %arg1, %c0_i32, %c0_i32_0 : i32, i32, i32
  }
  func.func @transform_3(%arg0: i32, %arg1: i32) -> (i32, i32, i32) {
    %c0_i32 = arith.constant 0 : i32
    %c0_i32_0 = arith.constant 0 : i32
    %c0_i32_1 = arith.constant 0 : i32
    return %arg1, %c0_i32, %c0_i32_0 : i32, i32, i32
  }
  func.func @transform_4(%arg0: i32, %arg1: i32) -> (i32, i32, i32) {
    %c0_i32 = arith.constant 0 : i32
    %c0_i32_0 = arith.constant 0 : i32
    %c0_i32_1 = arith.constant 0 : i32
    return %arg1, %c0_i32, %c0_i32_0 : i32, i32, i32
  }
  func.func @transform_5(%arg0: i32, %arg1: i32) -> (i32, i32, i32) {
    %c0_i32 = arith.constant 0 : i32
    %c0_i32_0 = arith.constant 0 : i32
    %c0_i32_1 = arith.constant 0 : i32
    return %arg1, %c0_i32, %c0_i32_0 : i32, i32, i32
  }
  func.func @transform_6(%arg0: i32, %arg1: i32) -> (i32, i32, i32) {
    %c0_i32 = arith.constant 0 : i32
    %c0_i32_0 = arith.constant 0 : i32
    %c0_i32_1 = arith.constant 0 : i32
    return %arg1, %c0_i32, %c0_i32_0 : i32, i32, i32
  }
  func.func @transform_7(%arg0: i32, %arg1: i32) -> (i32, i32, i32) {
    %c0_i32 = arith.constant 0 : i32
    %c0_i32_0 = arith.constant 0 : i32
    %c0_i32_1 = arith.constant 0 : i32
    return %arg1, %c0_i32, %c0_i32_0 : i32, i32, i32
  }
  func.func @transform_8(%arg0: i32, %arg1: i32) -> (i32, i32, i32) {
    %c0_i32 = arith.constant 0 : i32
    %c0_i32_0 = arith.constant 0 : i32
    %c0_i32_1 = arith.constant 0 : i32
    return %arg1, %c0_i32, %c0_i32_0 : i32, i32, i32
  }
  func.func @transform_9(%arg0: i32, %arg1: i32) -> (i32, i32, i32) {
    %c0_i32 = arith.constant 0 : i32
    %c0_i32_0 = arith.constant 0 : i32
    %c0_i32_1 = arith.constant 0 : i32
    return %arg1, %c0_i32, %c0_i32_0 : i32, i32, i32
  }
  func.func @transform_10(%arg0: i32, %arg1: i32) -> (i32, i32, i32) {
    %c0_i32 = arith.constant 0 : i32
    %c0_i32_0 = arith.constant 0 : i32
    %c0_i32_1 = arith.constant 0 : i32
    return %arg1, %c0_i32, %c0_i32_0 : i32, i32, i32
  }
  func.func @transform_11(%arg0: i32, %arg1: i32) -> (i32, i32, i32) {
    %c0_i32 = arith.constant 0 : i32
    %c0_i32_0 = arith.constant 0 : i32
    %c0_i32_1 = arith.constant 0 : i32
    return %arg1, %c0_i32, %c0_i32_0 : i32, i32, i32
  }
  func.func @transform_12(%arg0: i32, %arg1: i32) -> (i32, i32, i32) {
    %c0_i32 = arith.constant 0 : i32
    %c0_i32_0 = arith.constant 0 : i32
    %c0_i32_1 = arith.constant 0 : i32
    return %arg1, %c0_i32, %c0_i32_0 : i32, i32, i32
  }
  func.func @transform_13(%arg0: i32, %arg1: i32) -> (i32, i32, i32) {
    %c0_i32 = arith.constant 0 : i32
    %c0_i32_0 = arith.constant 0 : i32
    %c0_i32_1 = arith.constant 0 : i32
    return %arg1, %c0_i32, %c0_i32_0 : i32, i32, i32
  }
  func.func @transform_14(%arg0: i32, %arg1: i32) -> (i32, i32, i32) {
    %c0_i32 = arith.constant 0 : i32
    %c0_i32_0 = arith.constant 0 : i32
    %c0_i32_1 = arith.constant 0 : i32
    return %arg0, %c0_i32, %c0_i32_0 : i32, i32, i32
  }
}

module attributes {stable_mosaic.version = 11 : i64} {
  func.func @_text_head_logits_kernel(%arg0: memref<2x32xf32, #tpu.memory_space<vmem>>, %arg1: memref<1x32xf32, #tpu.memory_space<vmem>>, %arg2: memref<1x32xf32, #tpu.memory_space<vmem>>, %arg3: memref<32x32xbf16, #tpu.memory_space<vmem>>, %arg4: memref<2x32xf32, #tpu.memory_space<vmem>>, %arg5: memref<1xf32, #tpu.memory_space<smem>>, %arg6: memref<2x2xf32, #tpu.memory_space<vmem>>) attributes {dimension_semantics = [], scalar_prefetch = 0 : i64, scratch_operands = 0 : i64, tpu.core_type = #tpu.core_type<tc>} {
    %c0 = arith.constant 0 : index
    %c0_0 = arith.constant 0 : index
    %0 = vector.load %arg0[%c0, %c0_0] : memref<2x32xf32, #tpu.memory_space<vmem>>, vector<2x32xf32>
    %c0_1 = arith.constant 0 : index
    %c0_2 = arith.constant 0 : index
    %1 = vector.load %arg1[%c0_1, %c0_2] : memref<1x32xf32, #tpu.memory_space<vmem>>, vector<1x32xf32>
    %c0_3 = arith.constant 0 : index
    %c0_4 = arith.constant 0 : index
    %2 = vector.load %arg2[%c0_3, %c0_4] : memref<1x32xf32, #tpu.memory_space<vmem>>, vector<1x32xf32>
    %cst = arith.constant dense<0.000000e+00> : vector<2xf32>
    %3 = vector.multi_reduction <add>, %0, %cst [1] : vector<2x32xf32> to vector<2xf32>
    %4 = vector.shape_cast %3 : vector<2xf32> to vector<2x1xf32>
    %cst_5 = arith.constant 3.200000e+01 : f32
    %5 = vector.broadcast %cst_5 : f32 to vector<2x1xf32>
    %6 = arith.divf %4, %5 : vector<2x1xf32>
    %7 = vector.broadcast %6 : vector<2x1xf32> to vector<2x32xf32>
    %8 = arith.subf %0, %7 : vector<2x32xf32>
    %9 = arith.mulf %8, %8 : vector<2x32xf32>
    %cst_6 = arith.constant dense<0.000000e+00> : vector<2xf32>
    %10 = vector.multi_reduction <add>, %9, %cst_6 [1] : vector<2x32xf32> to vector<2xf32>
    %11 = vector.shape_cast %10 : vector<2xf32> to vector<2x1xf32>
    %cst_7 = arith.constant 3.200000e+01 : f32
    %12 = vector.broadcast %cst_7 : f32 to vector<2x1xf32>
    %13 = arith.divf %11, %12 : vector<2x1xf32>
    %cst_8 = arith.constant 9.99999974E-6 : f32
    %14 = vector.broadcast %cst_8 : f32 to vector<2x1xf32>
    %15 = arith.addf %13, %14 : vector<2x1xf32>
    %16 = math.rsqrt %15 : vector<2x1xf32>
    %17 = vector.broadcast %16 : vector<2x1xf32> to vector<2x32xf32>
    %18 = arith.mulf %8, %17 : vector<2x32xf32>
    %19 = vector.broadcast %1 : vector<1x32xf32> to vector<2x32xf32>
    %20 = arith.mulf %18, %19 : vector<2x32xf32>
    %21 = vector.broadcast %2 : vector<1x32xf32> to vector<2x32xf32>
    %22 = arith.addf %20, %21 : vector<2x32xf32>
    %23 = arith.truncf %22 : vector<2x32xf32> to vector<2x32xbf16>
    %c0_9 = arith.constant 0 : index
    %c0_10 = arith.constant 0 : index
    %24 = vector.load %arg3[%c0_9, %c0_10] : memref<32x32xbf16, #tpu.memory_space<vmem>>, vector<32x32xbf16>
    %cst_11 = arith.constant dense<0.000000e+00> : vector<2x32xf32>
    %25 = tpu.matmul %23, %24, %cst_11 {dimension_numbers = #tpu.dot_dimension_numbers<[1], [0], [0], [1], [0, 0, 1, 1], [], []>} : vector<2x32xbf16>, vector<32x32xbf16>, vector<2x32xf32> -> vector<2x32xf32>
    %c0_12 = arith.constant 0 : index
    %c0_13 = arith.constant 0 : index
    %26 = vector.load %arg4[%c0_12, %c0_13] : memref<2x32xf32, #tpu.memory_space<vmem>>, vector<2x32xf32>
    %27 = arith.mulf %25, %25 : vector<2x32xf32>
    %cst_14 = arith.constant dense<0.000000e+00> : vector<2xf32>
    %28 = vector.multi_reduction <add>, %27, %cst_14 [1] : vector<2x32xf32> to vector<2xf32>
    %29 = vector.shape_cast %28 : vector<2xf32> to vector<2x1xf32>
    %30 = math.rsqrt %29 : vector<2x1xf32>
    %31 = vector.broadcast %30 : vector<2x1xf32> to vector<2x32xf32>
    %32 = arith.mulf %25, %31 : vector<2x32xf32>
    %33 = arith.mulf %26, %26 : vector<2x32xf32>
    %cst_15 = arith.constant dense<0.000000e+00> : vector<2xf32>
    %34 = vector.multi_reduction <add>, %33, %cst_15 [1] : vector<2x32xf32> to vector<2xf32>
    %35 = vector.shape_cast %34 : vector<2xf32> to vector<2x1xf32>
    %36 = math.rsqrt %35 : vector<2x1xf32>
    %37 = vector.broadcast %36 : vector<2x1xf32> to vector<2x32xf32>
    %38 = arith.mulf %26, %37 : vector<2x32xf32>
    %c0_16 = arith.constant 0 : index
    %39 = memref.load %arg5[%c0_16] : memref<1xf32, #tpu.memory_space<smem>>
    %40 = arith.truncf %38 : vector<2x32xf32> to vector<2x32xbf16>
    %41 = arith.truncf %32 : vector<2x32xf32> to vector<2x32xbf16>
    %cst_17 = arith.constant dense<0.000000e+00> : vector<2x2xf32>
    %42 = tpu.matmul %40, %41, %cst_17 {dimension_numbers = #tpu.dot_dimension_numbers<[1], [1], [0], [0], [0, 0, 1, 0], [], []>} : vector<2x32xbf16>, vector<2x32xbf16>, vector<2x2xf32> -> vector<2x2xf32>
    %43 = vector.broadcast %39 : f32 to vector<2x2xf32>
    %44 = arith.mulf %43, %42 : vector<2x2xf32>
    %c0_18 = arith.constant 0 : index
    %c0_19 = arith.constant 0 : index
    %45 = vector.load %arg6[%c0_18, %c0_19] : memref<2x2xf32, #tpu.memory_space<vmem>>, vector<2x2xf32>
    tpu.vector_store %arg6[%c0_18, %c0_19], %44 {strides = array<i32>} : memref<2x2xf32, #tpu.memory_space<vmem>>, vector<2x2xf32>,
    return
  }
}

</mosaic_0001>

<llo_original>
// kernel: clip_forward.3
$region0: #{clip_forward.3}
  #allocation0 [shape = 'u32[]', space=smem, size = 0x4, offset = 0x4, fixed_abs, tag = 'smem constant byte address 0x4 - core index']
  #allocation1 [shape = 'u32[144,128]{1,0:T(1,128)}', space=vmem, size = 0x12000, scoped, tag = 'internal scratch']
  %s0 = inlined_call_operand.vmem [shape: bf16[3,512], index: 0, kind: input, shape index: {}]
  %s1 = inlined_call_operand.vmem [shape: bf16[3,3], index: 1, kind: input, shape index: {}]
  %s2 = inlined_call_operand.vmem [shape: f32[3,512], index: 2, kind: output, shape index: {}]
  %s3 = sld [smem:[#allocation0]]
  $region18: #{clip_forward.3} parent=0
    _
  %s5 = ssub.s32 1, %s3
  %s6 = scalar_select 0, %s5, %s3
  // Predicated region
  $region2: #{clip_forward.3} parent=0 // pred_check
    _
  $region3: #{clip_forward.3} parent=0 // pred_check_branch
    %8 = sbr.rel (0) target = $region5
  $region4: #{clip_forward.3} parent=0 // pred_region
    _
  $region5: #{clip_forward.3} parent=0 // pred_fallthru
    _
  // Predicated region
  $region6: #{clip_forward.3} parent=0 // pred_check
    _
  $region7: #{clip_forward.3} parent=0 // pred_check_branch
    %10 = sbr.rel (0) target = $region9
  $region8: #{clip_forward.3} parent=0 // pred_region
    _
  $region9: #{clip_forward.3} parent=0 // pred_fallthru
    _
  %v12 = vld [vmem:[%s1] sm:$0x3]
  %v13 = vld [vmem:[%s0] sm:$0xff]
  %v15 = vcombine.high %v13, %v13
  %v17 = vunpack.c.l.s4 1983009808
  %v18 = vunpack.c.0.s8 %v17
  %v19 = vlaneseq
  %v20 = vshrl.u32 %v19, 7
  %v21 = vsub.s32 %v18, %v20
  %v22 = vrot.slane %v13, %v21
  %v24 = vunpack.c.l.s4 1983009808
  %v25 = vunpack.c.0.s8 %v24
  %v26 = vlaneseq
  %v27 = vshrl.u32 %v26, 7
  %v28 = vsub.s32 %v25, %v27
  %v29 = vrot.slane %v15, %v28
  %v30 = vcombine.high %v22, %v22
  %v31 = vcombine.high %v29, %v29
  %vm32 = vcmask 23552
  %v34 = vsel %vm32, %v12, 0
  %vm36 = vcmask 1040384
  %vm37 = vcmask 1041408
  %v38 = vsel %vm36, 4294967295, 65535
  %v39 = vsel %vm37, %v38, 0
  %v41 = vand.u32 %v22, %v39
  %v44 = vand.u32 %v30, %v39
  %v47 = vand.u32 %v29, %v39
  %v50 = vand.u32 %v31, %v39
  %52 = vmatprep.subr.bf16.mxu0 %v44
  %53 = vmatpush1.bf16.msra.mxu0 %v41
  %54 = vmatprep.subr.bf16.mxu0 0
  %55 = vmatpush1.bf16.msra.mxu0 0
  %56 = vmatprep.subr.bf16.mxu0 0
  %57 = vmatpush1.bf16.msra.mxu0 0
  %58 = vmatprep.subr.bf16.mxu0 0
  %59 = vmatpush1.bf16.msra.mxu0 0
  %60 = vmatprep.subr.bf16.mxu0 0
  %61 = vmatpush1.bf16.msra.mxu0 0
  %62 = vmatprep.subr.bf16.mxu0 0
  %63 = vmatpush1.bf16.msra.mxu0 0
  %64 = vmatprep.subr.bf16.mxu0 0
  %65 = vmatpush1.bf16.msra.mxu0 0
  %66 = vmatprep.subr.bf16.mxu0 0
  %67 = vmatpush1.bf16.msra.mxu0 0
  %68 = vmatprep.subr.bf16.mxu0 0
  %69 = vmatpush1.bf16.msra.mxu0 0
  %70 = vmatprep.subr.bf16.mxu0 0
  %71 = vmatpush1.bf16.msra.mxu0 0
  %72 = vmatprep.subr.bf16.mxu0 0
  %73 = vmatpush1.bf16.msra.mxu0 0
  %74 = vmatprep.subr.bf16.mxu0 0
  %75 = vmatpush1.bf16.msra.mxu0 0
  %76 = vmatprep.subr.bf16.mxu0 0
  %77 = vmatpush1.bf16.msra.mxu0 0
  %78 = vmatprep.subr.bf16.mxu0 0
  %79 = vmatpush1.bf16.msra.mxu0 0
  %80 = vmatprep.subr.bf16.mxu0 0
  %81 = vmatpush1.bf16.msra.mxu0 0
  %82 = vmatprep.subr.bf16.mxu0 0
  %83 = vmatpush1.bf16.msra.mxu0 0
  %84 = vmatprep.mubr.bf16.mxu0 0
  %85 = vmatmul.mubr.bf16.gmra.mrb[0].mxu0 %v34
  %v86 = vpop.f32.mrb[0].mxu0
  %v87 = vadd.f32 0.0, %v86
  %v88 = vpop.f32.mrb[0].mxu0
  %v89 = vadd.f32 0.0, %v88
  %v90 = vpop.f32.mrb[0].mxu0
  %v91 = vpop.f32.mrb[0].mxu0
  %92 = vdwg.mxu0
  %93 = vmatprep.subr.bf16.mxu0 %v50
  %94 = vmatpush1.bf16.msra.mxu0 %v47
  %95 = vmatprep.subr.bf16.mxu0 0
  %96 = vmatpush1.bf16.msra.mxu0 0
  %97 = vmatprep.subr.bf16.mxu0 0
  %98 = vmatpush1.bf16.msra.mxu0 0
  %99 = vmatprep.subr.bf16.mxu0 0
  %100 = vmatpush1.bf16.msra.mxu0 0
  %101 = vmatprep.subr.bf16.mxu0 0
  %102 = vmatpush1.bf16.msra.mxu0 0
  %103 = vmatprep.subr.bf16.mxu0 0
  %104 = vmatpush1.bf16.msra.mxu0 0
  %105 = vmatprep.subr.bf16.mxu0 0
  %106 = vmatpush1.bf16.msra.mxu0 0
  %107 = vmatprep.subr.bf16.mxu0 0
  %108 = vmatpush1.bf16.msra.mxu0 0
  %109 = vmatprep.subr.bf16.mxu0 0
  %110 = vmatpush1.bf16.msra.mxu0 0
  %111 = vmatprep.subr.bf16.mxu0 0
  %112 = vmatpush1.bf16.msra.mxu0 0
  %113 = vmatprep.subr.bf16.mxu0 0
  %114 = vmatpush1.bf16.msra.mxu0 0
  %115 = vmatprep.subr.bf16.mxu0 0
  %116 = vmatpush1.bf16.msra.mxu0 0
  %117 = vmatprep.subr.bf16.mxu0 0
  %118 = vmatpush1.bf16.msra.mxu0 0
  %119 = vmatprep.subr.bf16.mxu0 0
  %120 = vmatpush1.bf16.msra.mxu0 0
  %121 = vmatprep.subr.bf16.mxu0 0
  %122 = vmatpush1.bf16.msra.mxu0 0
  %123 = vmatprep.subr.bf16.mxu0 0
  %124 = vmatpush1.bf16.msra.mxu0 0
  %125 = vmatprep.mubr.bf16.mxu0 0
  %126 = vmatmul.mubr.bf16.gmra.mrb[0].mxu0 %v34
  %v127 = vpop.f32.mrb[0].mxu0
  %v128 = vadd.f32 0.0, %v127
  %v129 = vpop.f32.mrb[0].mxu0
  %v130 = vadd.f32 0.0, %v129
  %v131 = vpop.f32.mrb[0].mxu0
  %v132 = vpop.f32.mrb[0].mxu0
  %133 = vdwg.mxu0
  %v138 = vcombine.low %v87, %v89
  %v139 = vcombine.low %v128, %v130
  %142 = vst [vmem:[%s2] sm:$0x77] %v138
  %143 = vst [vmem:[%s2 + $0x8] sm:$0x77] %v139
  // Predicated region
  $region10: #{clip_forward.3} parent=0 // pred_check
    _
  $region11: #{clip_forward.3} parent=0 // pred_check_branch
    %145 = sbr.rel (0) target = $region13
  $region12: #{clip_forward.3} parent=0 // pred_region
    _
  $region13: #{clip_forward.3} parent=0 // pred_fallthru
    _
  // Predicated region
  $region14: #{clip_forward.3} parent=0 // pred_check
    _
  $region15: #{clip_forward.3} parent=0 // pred_check_branch
    %147 = sbr.rel (0) target = $region17
  $region16: #{clip_forward.3} parent=0 // pred_region
    _
  $region17: #{clip_forward.3} parent=0 // pred_fallthru
    _

// kernel: clip_forward.5
$region0: #{clip_forward.5}
  #allocation0 [shape = 'u32[]', space=smem, size = 0x4, offset = 0x4, fixed_abs, tag = 'smem constant byte address 0x4 - core index']
  #allocation1 [shape = 'u32[144,128]{1,0:T(1,128)}', space=vmem, size = 0x12000, scoped, tag = 'internal scratch']
  #allocation2 [shape = 'f32[1]{0:T(128)S(6)}', space=smem, size = 0x200, scoped, tag = 'scoped memory for clip_forward.5']
  %s0 = inlined_call_operand.vmem [shape: f32[2,32], index: 0, kind: input, shape index: {}]
  %s1 = inlined_call_operand.vmem [shape: f32[1,32], index: 1, kind: input, shape index: {}]
  %s2 = inlined_call_operand.vmem [shape: f32[1,32], index: 2, kind: input, shape index: {}]
  %s3 = inlined_call_operand.vmem [shape: bf16[32,32], index: 3, kind: input, shape index: {}]
  %s4 = inlined_call_operand.vmem [shape: f32[2,32], index: 4, kind: input, shape index: {}]
  %s5 = inlined_call_operand.<no memory space> [shape: f32[1], index: 5, kind: input, shape index: {}]
  %s6 = inlined_call_operand.vmem [shape: f32[2,2], index: 6, kind: output, shape index: {}]
  %s7 = sld [smem:[#allocation0]]
  $region34: #{clip_forward.5} parent=0
    _
  %s9 = ssub.s32 1, %s7
  %s10 = scalar_select 0, %s9, %s7
  %11 = sst [smem:[#allocation2]] %s5
  // Predicated region
  $region2: #{clip_forward.5} parent=0 // pred_check
    _
  $region3: #{clip_forward.5} parent=0 // pred_check_branch
    %13 = sbr.rel (0) target = $region5
  $region4: #{clip_forward.5} parent=0 // pred_region
    _
  $region5: #{clip_forward.5} parent=0 // pred_fallthru
    _
  // Predicated region
  $region6: #{clip_forward.5} parent=0 // pred_check
    _
  $region7: #{clip_forward.5} parent=0 // pred_check_branch
    %15 = sbr.rel (0) target = $region9
  $region8: #{clip_forward.5} parent=0 // pred_region
    _
  $region9: #{clip_forward.5} parent=0 // pred_fallthru
    _
  // Predicated region
  $region10: #{clip_forward.5} parent=0 // pred_check
    _
  $region11: #{clip_forward.5} parent=0 // pred_check_branch
    %17 = sbr.rel (0) target = $region13
  $region12: #{clip_forward.5} parent=0 // pred_region
    _
  $region13: #{clip_forward.5} parent=0 // pred_fallthru
    _
  // Predicated region
  $region14: #{clip_forward.5} parent=0 // pred_check
    _
  $region15: #{clip_forward.5} parent=0 // pred_check_branch
    %19 = sbr.rel (0) target = $region17
  $region16: #{clip_forward.5} parent=0 // pred_region
    _
  $region17: #{clip_forward.5} parent=0 // pred_fallthru
    _
  // Predicated region
  $region18: #{clip_forward.5} parent=0 // pred_check
    _
  $region19: #{clip_forward.5} parent=0 // pred_check_branch
    %21 = sbr.rel (0) target = $region21
  $region20: #{clip_forward.5} parent=0 // pred_region
    _
  $region21: #{clip_forward.5} parent=0 // pred_fallthru
    _
  // Predicated region
  $region22: #{clip_forward.5} parent=0 // pred_check
    _
  $region23: #{clip_forward.5} parent=0 // pred_check_branch
    %23 = sbr.rel (0) target = $region25
  $region24: #{clip_forward.5} parent=0 // pred_region
    _
  $region25: #{clip_forward.5} parent=0 // pred_fallthru
    _
  %v25 = vld [vmem:[%s0] sm:$0x3]
  %v26 = vld [vmem:[%s1] sm:$0x1]
  %v27 = vld [vmem:[%s2] sm:$0x1]
  %vm28 = vcmask 254976
  %v29 = vsel %vm28, %v25, 0.0
  %30 = vadd.xlane.f32.xlu0 %v29
  %v31 = vpop.xlane.xlu0 %30
  %v32 = vrcp.pop 32.0
  %v33 = vmul.f32 %v31, %v32
  %v34 = vsub.f32 %v25, %v33
  %v35 = vmul.f32 %v34, %v34
  %v36 = vsel %vm28, %v35, 0.0
  %37 = vadd.xlane.f32.xlu0 %v36
  %v38 = vpop.xlane.xlu0 %37
  %v39 = vmul.f32 %v38, %v32
  %v40 = vadd.f32 %v39, 1e-05
  %v41 = vrsqrt.pop %v40
  %v42 = vmul.f32 %v34, %v41
  %v44 = vlaneseq
  %v45 = vshrl.u32 %v44, 7
  %v46 = vsub.s32 0, %v45
  %v47 = vrot.slane %v26, %v46
  %v49 = vmul.f32 %v42, %v47
  %v51 = vlaneseq
  %v52 = vshrl.u32 %v51, 7
  %v53 = vsub.s32 0, %v52
  %v54 = vrot.slane %v27, %v53
  %v56 = vadd.f32 %v49, %v54
  %v57 = vpack.c.bf16 %v56, %v56
  %v58 = vld [vmem:[%s3] sm:$0xf]
  %v59 = vld [vmem:[%s3 + $0x4] sm:$0xf]
  %v60 = vld [vmem:[%s3 + $0x8] sm:$0xf]
  %v61 = vld [vmem:[%s3 + $0xc] sm:$0xf]
  %v66 = vunpack.c.l.b16 %v58
  %v67 = vunpack.c.l.b16 %v59
  %v68 = vunpack.c.l.b16 %v60
  %v69 = vunpack.c.l.b16 %v61
  %v70 = vpack.c.b16 %v67, %v66
  %v71 = vpack.c.b16 %v69, %v68
  %vm74 = vcmask 261120
  %v76 = vsel %vm74, %v57, 0
  %78 = vmatprep.subr.bf16.mxu0 0
  %79 = vmatpush1.bf16.msra.mxu0 %v70
  %80 = vmatprep.subr.bf16.mxu0 0
  %81 = vmatpush1.bf16.msra.mxu0 %v71
  %82 = vmatprep.subr.bf16.mxu0 0
  %83 = vmatpush1.bf16.msra.mxu0 0
  %84 = vmatprep.subr.bf16.mxu0 0
  %85 = vmatpush1.bf16.msra.mxu0 0
  %86 = vmatprep.subr.bf16.mxu0 0
  %87 = vmatpush1.bf16.msra.mxu0 0
  %88 = vmatprep.subr.bf16.mxu0 0
  %89 = vmatpush1.bf16.msra.mxu0 0
  %90 = vmatprep.subr.bf16.mxu0 0
  %91 = vmatpush1.bf16.msra.mxu0 0
  %92 = vmatprep.subr.bf16.mxu0 0
  %93 = vmatpush1.bf16.msra.mxu0 0
  %94 = vmatprep.subr.bf16.mxu0 0
  %95 = vmatpush1.bf16.msra.mxu0 0
  %96 = vmatprep.subr.bf16.mxu0 0
  %97 = vmatpush1.bf16.msra.mxu0 0
  %98 = vmatprep.subr.bf16.mxu0 0
  %99 = vmatpush1.bf16.msra.mxu0 0
  %100 = vmatprep.subr.bf16.mxu0 0
  %101 = vmatpush1.bf16.msra.mxu0 0
  %102 = vmatprep.subr.bf16.mxu0 0
  %103 = vmatpush1.bf16.msra.mxu0 0
  %104 = vmatprep.subr.bf16.mxu0 0
  %105 = vmatpush1.bf16.msra.mxu0 0
  %106 = vmatprep.subr.bf16.mxu0 0
  %107 = vmatpush1.bf16.msra.mxu0 0
  %108 = vmatprep.subr.bf16.mxu0 0
  %109 = vmatpush1.bf16.msra.mxu0 0
  %110 = vmatprep.mubr.bf16.mxu0 0
  %111 = vmatmul.mubr.bf16.gmra.mrb[0].mxu0 %v76
  %v112 = vpop.f32.mrb[0].mxu0
  %v113 = vadd.f32 0.0, %v112
  %v114 = vpop.f32.mrb[0].mxu0
  %v115 = vpop.f32.mrb[0].mxu0
  %v116 = vpop.f32.mrb[0].mxu0
  %117 = vdwg.mxu0
  %v118 = vld [vmem:[%s4] sm:$0x3]
  %v119 = vmul.f32 %v113, %v113
  %v120 = vsel %vm28, %v119, 0.0
  %121 = vadd.xlane.f32.xlu0 %v120
  %v122 = vpop.xlane.xlu0 %121
  %v123 = vrsqrt.pop %v122
  %v124 = vmul.f32 %v113, %v123
  %v125 = vmul.f32 %v118, %v118
  %v126 = vsel %vm28, %v125, 0.0
  %127 = vadd.xlane.f32.xlu0 %v126
  %v128 = vpop.xlane.xlu0 %127
  %v129 = vrsqrt.pop %v128
  %v130 = vmul.f32 %v118, %v129
  %s131 = sld [smem:[#allocation2]]
  %v132 = vpack.c.bf16 %v130, %v130
  %v133 = vpack.c.bf16 %v124, %v124
  %v135 = vsel %vm74, %v132, 0
  %v138 = vsel %vm74, %v133, 0
  %140 = vmatprep.subr.bf16.mxu0 0
  %141 = vmatpush1.bf16.xpose.msra.mxu0 %v138
  %142 = vmatprep.subr.bf16.mxu0 0
  %143 = vmatpush1.bf16.xpose.msra.mxu0 0
  %144 = vmatprep.subr.bf16.mxu0 0
  %145 = vmatpush1.bf16.xpose.msra.mxu0 0
  %146 = vmatprep.subr.bf16.mxu0 0
  %147 = vmatpush1.bf16.xpose.msra.mxu0 0
  %148 = vmatprep.subr.bf16.mxu0 0
  %149 = vmatpush1.bf16.xpose.msra.mxu0 0
  %150 = vmatprep.subr.bf16.mxu0 0
  %151 = vmatpush1.bf16.xpose.msra.mxu0 0
  %152 = vmatprep.subr.bf16.mxu0 0
  %153 = vmatpush1.bf16.xpose.msra.mxu0 0
  %154 = vmatprep.subr.bf16.mxu0 0
  %155 = vmatpush1.bf16.xpose.msra.mxu0 0
  %156 = vmatprep.subr.bf16.mxu0 0
  %157 = vmatpush1.bf16.xpose.msra.mxu0 0
  %158 = vmatprep.subr.bf16.mxu0 0
  %159 = vmatpush1.bf16.xpose.msra.mxu0 0
  %160 = vmatprep.subr.bf16.mxu0 0
  %161 = vmatpush1.bf16.xpose.msra.mxu0 0
  %162 = vmatprep.subr.bf16.mxu0 0
  %163 = vmatpush1.bf16.xpose.msra.mxu0 0
  %164 = vmatprep.subr.bf16.mxu0 0
  %165 = vmatpush1.bf16.xpose.msra.mxu0 0
  %166 = vmatprep.subr.bf16.mxu0 0
  %167 = vmatpush1.bf16.xpose.msra.mxu0 0
  %168 = vmatprep.subr.bf16.mxu0 0
  %169 = vmatpush1.bf16.xpose.msra.mxu0 0
  %170 = vmatprep.subr.bf16.mxu0 0
  %171 = vmatpush1.bf16.xpose.msra.mxu0 0
  %172 = vmatprep.mubr.bf16.mxu0 0
  %173 = vmatmul.mubr.bf16.gmra.mrb[0].mxu0 %v135
  %v174 = vpop.f32.mrb[0].mxu0
  %v175 = vadd.f32 0.0, %v174
  %v176 = vpop.f32.mrb[0].mxu0
  %v177 = vpop.f32.mrb[0].mxu0
  %v178 = vpop.f32.mrb[0].mxu0
  %179 = vdwg.mxu0
  %v180 = vstv %s131
  %v181 = vmul.f32 %v180, %v175
  %vm182 = vcmask 9216
  %183 = vst.msk [vmem:[%s6] sm:$0x3] %vm182, %v181
  // Predicated region
  $region26: #{clip_forward.5} parent=0 // pred_check
    _
  $region27: #{clip_forward.5} parent=0 // pred_check_branch
    %185 = sbr.rel (0) target = $region29
  $region28: #{clip_forward.5} parent=0 // pred_region
    _
  $region29: #{clip_forward.5} parent=0 // pred_fallthru
    _
  // Predicated region
  $region30: #{clip_forward.5} parent=0 // pred_check
    _
  $region31: #{clip_forward.5} parent=0 // pred_check_branch
    %187 = sbr.rel (0) target = $region33
  $region32: #{clip_forward.5} parent=0 // pred_region
    _
  $region33: #{clip_forward.5} parent=0 // pred_fallthru
    _

// kernel: clip_forward.4
$region0: #{clip_forward.4}
  #allocation0 [shape = 'u32[]', space=smem, size = 0x4, offset = 0x4, fixed_abs, tag = 'smem constant byte address 0x4 - core index']
  #allocation1 [shape = 'u32[144,128]{1,0:T(1,128)}', space=vmem, size = 0x12000, scoped, tag = 'internal scratch']
  %s0 = inlined_call_operand.vmem [shape: f32[2,8,32], index: 0, kind: input, shape index: {}]
  %s1 = inlined_call_operand.vmem [shape: f32[8,8], index: 1, kind: input, shape index: {}]
  %s2 = inlined_call_operand.vmem [shape: f32[2,1,32], index: 2, kind: input, shape index: {}]
  %s3 = inlined_call_operand.vmem [shape: f32[2,1,32], index: 3, kind: input, shape index: {}]
  %s4 = inlined_call_operand.vmem [shape: bf16[2,32,96], index: 4, kind: input, shape index: {}]
  %s5 = inlined_call_operand.vmem [shape: f32[2,1,96], index: 5, kind: input, shape index: {}]
  %s6 = inlined_call_operand.vmem [shape: bf16[2,32,32], index: 6, kind: input, shape index: {}]
  %s7 = inlined_call_operand.vmem [shape: f32[2,1,32], index: 7, kind: input, shape index: {}]
  %s8 = inlined_call_operand.vmem [shape: f32[2,1,32], index: 8, kind: input, shape index: {}]
  %s9 = inlined_call_operand.vmem [shape: f32[2,1,32], index: 9, kind: input, shape index: {}]
  %s10 = inlined_call_operand.vmem [shape: bf16[2,32,128], index: 10, kind: input, shape index: {}]
  %s11 = inlined_call_operand.vmem [shape: f32[2,1,128], index: 11, kind: input, shape index: {}]
  %s12 = inlined_call_operand.vmem [shape: bf16[2,128,32], index: 12, kind: input, shape index: {}]
  %s13 = inlined_call_operand.vmem [shape: f32[2,1,32], index: 13, kind: input, shape index: {}]
  %s14 = inlined_call_operand.vmem [shape: f32[2,8,32], index: 14, kind: output, shape index: {}]
  %s15 = sld [smem:[#allocation0]]
  $region93: #{clip_forward.4} parent=0
    _
  %s17 = ssub.s32 1, %s15
  %s18 = scalar_select 0, %s17, %s15
  loop: start=0, step=1, limit=4
  $region2: #{clip_forward.4} parent=0 // loop_pre_header
    _
  $region3: #{clip_forward.4} parent=0 // loop_header
    %s20 = sphi 0, %s24
    %p21 = scmp.ge.s32.totalorder %s20, 4
    %s27 = sphi 0, %s39
    %s28 = sphi 0, %s35
    %s29 = sphi 0, %s27
    %s30 = sphi 0, %s28
    %s31 = sphi 0, %s29
    %s32 = sphi 0, %s30
    %s42 = sphi 0, %s44
    %s45 = sphi 0, %s42
    %s46 = sphi 0, %s45
    %s62 = sphi 0, %s46
    %s66 = sphi 0, %s66
    %s68 = sphi 0, %s66
    %s69 = sphi 0, %s68
    %s83 = sphi 0, %s69
    %s89 = sphi 0, %s91
    %s92 = sphi 0, %s89
    %s93 = sphi 0, %s92
    %s109 = sphi 0, %s93
    %s115 = sphi 0, %s117
    %s118 = sphi 0, %s115
    %s119 = sphi 0, %s118
    %s135 = sphi 0, %s119
    %s141 = sphi 0, %s143
    %s144 = sphi 0, %s141
    %s145 = sphi 0, %s144
    %s161 = sphi 0, %s145
    %s167 = sphi 0, %s169
    %s170 = sphi 0, %s167
    %s171 = sphi 0, %s170
    %s187 = sphi 0, %s171
    %s193 = sphi 0, %s195
    %s196 = sphi 0, %s193
    %s197 = sphi 0, %s196
    %s213 = sphi 0, %s197
    %s219 = sphi 0, %s221
    %s222 = sphi 0, %s219
    %s223 = sphi 0, %s222
    %s239 = sphi 0, %s223
    %s245 = sphi 0, %s247
    %s248 = sphi 0, %s245
    %s249 = sphi 0, %s248
    %s265 = sphi 0, %s249
    %s271 = sphi 0, %s273
    %s274 = sphi 0, %s271
    %s275 = sphi 0, %s274
    %s291 = sphi 0, %s275
    %s297 = sphi 0, %s299
    %s300 = sphi 0, %s297
    %s301 = sphi 0, %s300
    %s317 = sphi 0, %s301
    %s323 = sphi 0, %s325
    %s326 = sphi 0, %s323
    %s327 = sphi 0, %s326
    %s343 = sphi 0, %s327
    %s349 = sphi 0, %s351
    %s352 = sphi 0, %s349
    %s353 = sphi 0, %s352
    %s369 = sphi 0, %s353
    %s375 = sphi 0, %s377
    %s378 = sphi 0, %s375
    %s379 = sphi 0, %s378
    %s395 = sphi 0, %s379
    %s401 = sphi 0, %s403
    %s404 = sphi 0, %s401
    %s405 = sphi 0, %s404
    %s421 = sphi 0, %s405
  $region4: #{clip_forward.4} parent=0 // loop_header_branch
    %23 = sbr.rel (%p21) target = $region8
  $region5: #{clip_forward.4} parent=0 // loop_body
    %s25 = ssub.s32 %s20, 1
    %s26 = ssub.s32 %s20, 2
    %s33 = sadd.s32 1, %s28
    %p34 = scmp.ge.s32.totalorder %s33, 2
    %s35 = scalar_select %p34, 0, %s33
    %s36 = sadd.s32 1, %s27
    %s37 = scalar_select %p34, %s36, %s27
    %p38 = scmp.ge.s32.totalorder %s37, 1
    %s39 = scalar_select %p38, 0, %s37
    %s40 = ssub.s32 %s27, %s39
    %p41 = scmp.eq.s32.totalorder %s40, 0
    %s43 = sadd.s32 %s42, 1
    %s44 = scalar_select %p41, %s42, %s43
    %p47 = pneg %p41
    %p48 = scmp.eq.s32.totalorder %s20, 1
    %p49 = por %p47, %p48
    %p50 = scmp.ne.s32.totalorder %s42, %s45
    %p51 = scmp.eq.s32.totalorder %s20, 0
    %p52 = por %p50, %p51
    %p53 = scmp.ne.s32.totalorder %s42, %s45
    %p54 = scmp.eq.s32.totalorder %s25, 1
    %p55 = por %p53, %p54
    %p56 = scmp.ne.s32.totalorder %s45, %s46
    %p57 = scmp.eq.s32.totalorder %s25, 0
    %p58 = por %p56, %p57
    %p59 = scmp.ne.s32.totalorder %s45, %s46
    %p60 = scmp.eq.s32.totalorder %s26, 1
    %p61 = por %p59, %p60
    %p63 = scmp.ne.s32.totalorder %s46, %s62
    %p64 = scmp.eq.s32.totalorder %s26, 0
    %p65 = por %p63, %p64
    %s67 = sadd.s32 %s66, 1
    %p70 = scmp.eq.s32.totalorder %s20, 1
    %p71 = scmp.ne.s32.totalorder %s66, %s68
    %p72 = scmp.eq.s32.totalorder %s20, 0
    %p73 = por %p71, %p72
    %p74 = scmp.ne.s32.totalorder %s66, %s68
    %p75 = scmp.eq.s32.totalorder %s25, 1
    %p76 = por %p74, %p75
    %p77 = scmp.ne.s32.totalorder %s68, %s69
    %p78 = scmp.eq.s32.totalorder %s25, 0
    %p79 = por %p77, %p78
    %p80 = scmp.ne.s32.totalorder %s68, %s69
    %p81 = scmp.eq.s32.totalorder %s26, 1
    %p82 = por %p80, %p81
    %p84 = scmp.ne.s32.totalorder %s69, %s83
    %p85 = scmp.eq.s32.totalorder %s26, 0
    %p86 = por %p84, %p85
    %s87 = ssub.s32 %s28, %s35
    %p88 = scmp.eq.s32.totalorder %s87, 0
    %s90 = sadd.s32 %s89, 1
    %s91 = scalar_select %p88, %s89, %s90
    %p94 = pneg %p88
    %p95 = scmp.eq.s32.totalorder %s20, 1
    %p96 = por %p94, %p95
    %p97 = scmp.ne.s32.totalorder %s89, %s92
    %p98 = scmp.eq.s32.totalorder %s20, 0
    %p99 = por %p97, %p98
    %p100 = scmp.ne.s32.totalorder %s89, %s92
    %p101 = scmp.eq.s32.totalorder %s25, 1
    %p102 = por %p100, %p101
    %p103 = scmp.ne.s32.totalorder %s92, %s93
    %p104 = scmp.eq.s32.totalorder %s25, 0
    %p105 = por %p103, %p104
    %p106 = scmp.ne.s32.totalorder %s92, %s93
    %p107 = scmp.eq.s32.totalorder %s26, 1
    %p108 = por %p106, %p107
    %p110 = scmp.ne.s32.totalorder %s93, %s109
    %p111 = scmp.eq.s32.totalorder %s26, 0
    %p112 = por %p110, %p111
    %s113 = ssub.s32 %s28, %s35
    %p114 = scmp.eq.s32.totalorder %s113, 0
    %s116 = sadd.s32 %s115, 1
    %s117 = scalar_select %p114, %s115, %s116
    %p120 = pneg %p114
    %p121 = scmp.eq.s32.totalorder %s20, 1
    %p122 = por %p120, %p121
    %p123 = scmp.ne.s32.totalorder %s115, %s118
    %p124 = scmp.eq.s32.totalorder %s20, 0
    %p125 = por %p123, %p124
    %p126 = scmp.ne.s32.totalorder %s115, %s118
    %p127 = scmp.eq.s32.totalorder %s25, 1
    %p128 = por %p126, %p127
    %p129 = scmp.ne.s32.totalorder %s118, %s119
    %p130 = scmp.eq.s32.totalorder %s25, 0
    %p131 = por %p129, %p130
    %p132 = scmp.ne.s32.totalorder %s118, %s119
    %p133 = scmp.eq.s32.totalorder %s26, 1
    %p134 = por %p132, %p133
    %p136 = scmp.ne.s32.totalorder %s119, %s135
    %p137 = scmp.eq.s32.totalorder %s26, 0
    %p138 = por %p136, %p137
    %s139 = ssub.s32 %s28, %s35
    %p140 = scmp.eq.s32.totalorder %s139, 0
    %s142 = sadd.s32 %s141, 1
    %s143 = scalar_select %p140, %s141, %s142
    %p146 = pneg %p140
    %p147 = scmp.eq.s32.totalorder %s20, 1
    %p148 = por %p146, %p147
    %p149 = scmp.ne.s32.totalorder %s141, %s144
    %p150 = scmp.eq.s32.totalorder %s20, 0
    %p151 = por %p149, %p150
    %p152 = scmp.ne.s32.totalorder %s141, %s144
    %p153 = scmp.eq.s32.totalorder %s25, 1
    %p154 = por %p152, %p153
    %p155 = scmp.ne.s32.totalorder %s144, %s145
    %p156 = scmp.eq.s32.totalorder %s25, 0
    %p157 = por %p155, %p156
    %p158 = scmp.ne.s32.totalorder %s144, %s145
    %p159 = scmp.eq.s32.totalorder %s26, 1
    %p160 = por %p158, %p159
    %p162 = scmp.ne.s32.totalorder %s145, %s161
    %p163 = scmp.eq.s32.totalorder %s26, 0
    %p164 = por %p162, %p163
    %s165 = ssub.s32 %s28, %s35
    %p166 = scmp.eq.s32.totalorder %s165, 0
    %s168 = sadd.s32 %s167, 1
    %s169 = scalar_select %p166, %s167, %s168
    %p172 = pneg %p166
    %p173 = scmp.eq.s32.totalorder %s20, 1
    %p174 = por %p172, %p173
    %p175 = scmp.ne.s32.totalorder %s167, %s170
    %p176 = scmp.eq.s32.totalorder %s20, 0
    %p177 = por %p175, %p176
    %p178 = scmp.ne.s32.totalorder %s167, %s170
    %p179 = scmp.eq.s32.totalorder %s25, 1
    %p180 = por %p178, %p179
    %p181 = scmp.ne.s32.totalorder %s170, %s171
    %p182 = scmp.eq.s32.totalorder %s25, 0
    %p183 = por %p181, %p182
    %p184 = scmp.ne.s32.totalorder %s170, %s171
    %p185 = scmp.eq.s32.totalorder %s26, 1
    %p186 = por %p184, %p185
    %p188 = scmp.ne.s32.totalorder %s171, %s187
    %p189 = scmp.eq.s32.totalorder %s26, 0
    %p190 = por %p188, %p189
    %s191 = ssub.s32 %s28, %s35
    %p192 = scmp.eq.s32.totalorder %s191, 0
    %s194 = sadd.s32 %s193, 1
    %s195 = scalar_select %p192, %s193, %s194
    %p198 = pneg %p192
    %p199 = scmp.eq.s32.totalorder %s20, 1
    %p200 = por %p198, %p199
    %p201 = scmp.ne.s32.totalorder %s193, %s196
    %p202 = scmp.eq.s32.totalorder %s20, 0
    %p203 = por %p201, %p202
    %p204 = scmp.ne.s32.totalorder %s193, %s196
    %p205 = scmp.eq.s32.totalorder %s25, 1
    %p206 = por %p204, %p205
    %p207 = scmp.ne.s32.totalorder %s196, %s197
    %p208 = scmp.eq.s32.totalorder %s25, 0
    %p209 = por %p207, %p208
    %p210 = scmp.ne.s32.totalorder %s196, %s197
    %p211 = scmp.eq.s32.totalorder %s26, 1
    %p212 = por %p210, %p211
    %p214 = scmp.ne.s32.totalorder %s197, %s213
    %p215 = scmp.eq.s32.totalorder %s26, 0
    %p216 = por %p214, %p215
    %s217 = ssub.s32 %s28, %s35
    %p218 = scmp.eq.s32.totalorder %s217, 0
    %s220 = sadd.s32 %s219, 1
    %s221 = scalar_select %p218, %s219, %s220
    %p224 = pneg %p218
    %p225 = scmp.eq.s32.totalorder %s20, 1
    %p226 = por %p224, %p225
    %p227 = scmp.ne.s32.totalorder %s219, %s222
    %p228 = scmp.eq.s32.totalorder %s20, 0
    %p229 = por %p227, %p228
    %p230 = scmp.ne.s32.totalorder %s219, %s222
    %p231 = scmp.eq.s32.totalorder %s25, 1
    %p232 = por %p230, %p231
    %p233 = scmp.ne.s32.totalorder %s222, %s223
    %p234 = scmp.eq.s32.totalorder %s25, 0
    %p235 = por %p233, %p234
    %p236 = scmp.ne.s32.totalorder %s222, %s223
    %p237 = scmp.eq.s32.totalorder %s26, 1
    %p238 = por %p236, %p237
    %p240 = scmp.ne.s32.totalorder %s223, %s239
    %p241 = scmp.eq.s32.totalorder %s26, 0
    %p242 = por %p240, %p241
    %s243 = ssub.s32 %s28, %s35
    %p244 = scmp.eq.s32.totalorder %s243, 0
    %s246 = sadd.s32 %s245, 1
    %s247 = scalar_select %p244, %s245, %s246
    %p250 = pneg %p244
    %p251 = scmp.eq.s32.totalorder %s20, 1
    %p252 = por %p250, %p251
    %p253 = scmp.ne.s32.totalorder %s245, %s248
    %p254 = scmp.eq.s32.totalorder %s20, 0
    %p255 = por %p253, %p254
    %p256 = scmp.ne.s32.totalorder %s245, %s248
    %p257 = scmp.eq.s32.totalorder %s25, 1
    %p258 = por %p256, %p257
    %p259 = scmp.ne.s32.totalorder %s248, %s249
    %p260 = scmp.eq.s32.totalorder %s25, 0
    %p261 = por %p259, %p260
    %p262 = scmp.ne.s32.totalorder %s248, %s249
    %p263 = scmp.eq.s32.totalorder %s26, 1
    %p264 = por %p262, %p263
    %p266 = scmp.ne.s32.totalorder %s249, %s265
    %p267 = scmp.eq.s32.totalorder %s26, 0
    %p268 = por %p266, %p267
    %s269 = ssub.s32 %s28, %s35
    %p270 = scmp.eq.s32.totalorder %s269, 0
    %s272 = sadd.s32 %s271, 1
    %s273 = scalar_select %p270, %s271, %s272
    %p276 = pneg %p270
    %p277 = scmp.eq.s32.totalorder %s20, 1
    %p278 = por %p276, %p277
    %p279 = scmp.ne.s32.totalorder %s271, %s274
    %p280 = scmp.eq.s32.totalorder %s20, 0
    %p281 = por %p279, %p280
    %p282 = scmp.ne.s32.totalorder %s271, %s274
    %p283 = scmp.eq.s32.totalorder %s25, 1
    %p284 = por %p282, %p283
    %p285 = scmp.ne.s32.totalorder %s274, %s275
    %p286 = scmp.eq.s32.totalorder %s25, 0
    %p287 = por %p285, %p286
    %p288 = scmp.ne.s32.totalorder %s274, %s275
    %p289 = scmp.eq.s32.totalorder %s26, 1
    %p290 = por %p288, %p289
    %p292 = scmp.ne.s32.totalorder %s275, %s291
    %p293 = scmp.eq.s32.totalorder %s26, 0
    %p294 = por %p292, %p293
    %s295 = ssub.s32 %s28, %s35
    %p296 = scmp.eq.s32.totalorder %s295, 0
    %s298 = sadd.s32 %s297, 1
    %s299 = scalar_select %p296, %s297, %s298
    %p302 = pneg %p296
    %p303 = scmp.eq.s32.totalorder %s20, 1
    %p304 = por %p302, %p303
    %p305 = scmp.ne.s32.totalorder %s297, %s300
    %p306 = scmp.eq.s32.totalorder %s20, 0
    %p307 = por %p305, %p306
    %p308 = scmp.ne.s32.totalorder %s297, %s300
    %p309 = scmp.eq.s32.totalorder %s25, 1
    %p310 = por %p308, %p309
    %p311 = scmp.ne.s32.totalorder %s300, %s301
    %p312 = scmp.eq.s32.totalorder %s25, 0
    %p313 = por %p311, %p312
    %p314 = scmp.ne.s32.totalorder %s300, %s301
    %p315 = scmp.eq.s32.totalorder %s26, 1
    %p316 = por %p314, %p315
    %p318 = scmp.ne.s32.totalorder %s301, %s317
    %p319 = scmp.eq.s32.totalorder %s26, 0
    %p320 = por %p318, %p319
    %s321 = ssub.s32 %s28, %s35
    %p322 = scmp.eq.s32.totalorder %s321, 0
    %s324 = sadd.s32 %s323, 1
    %s325 = scalar_select %p322, %s323, %s324
    %p328 = pneg %p322
    %p329 = scmp.eq.s32.totalorder %s20, 1
    %p330 = por %p328, %p329
    %p331 = scmp.ne.s32.totalorder %s323, %s326
    %p332 = scmp.eq.s32.totalorder %s20, 0
    %p333 = por %p331, %p332
    %p334 = scmp.ne.s32.totalorder %s323, %s326
    %p335 = scmp.eq.s32.totalorder %s25, 1
    %p336 = por %p334, %p335
    %p337 = scmp.ne.s32.totalorder %s326, %s327
    %p338 = scmp.eq.s32.totalorder %s25, 0
    %p339 = por %p337, %p338
    %p340 = scmp.ne.s32.totalorder %s326, %s327
    %p341 = scmp.eq.s32.totalorder %s26, 1
    %p342 = por %p340, %p341
    %p344 = scmp.ne.s32.totalorder %s327, %s343
    %p345 = scmp.eq.s32.totalorder %s26, 0
    %p346 = por %p344, %p345
    %s347 = ssub.s32 %s28, %s35
    %p348 = scmp.eq.s32.totalorder %s347, 0
    %s350 = sadd.s32 %s349, 1
    %s351 = scalar_select %p348, %s349, %s350
    %p354 = pneg %p348
    %p355 = scmp.eq.s32.totalorder %s20, 1
    %p356 = por %p354, %p355
    %p357 = scmp.ne.s32.totalorder %s349, %s352
    %p358 = scmp.eq.s32.totalorder %s20, 0
    %p359 = por %p357, %p358
    %p360 = scmp.ne.s32.totalorder %s349, %s352
    %p361 = scmp.eq.s32.totalorder %s25, 1
    %p362 = por %p360, %p361
    %p363 = scmp.ne.s32.totalorder %s352, %s353
    %p364 = scmp.eq.s32.totalorder %s25, 0
    %p365 = por %p363, %p364
    %p366 = scmp.ne.s32.totalorder %s352, %s353
    %p367 = scmp.eq.s32.totalorder %s26, 1
    %p368 = por %p366, %p367
    %p370 = scmp.ne.s32.totalorder %s353, %s369
    %p371 = scmp.eq.s32.totalorder %s26, 0
    %p372 = por %p370, %p371
    %s373 = ssub.s32 %s28, %s35
    %p374 = scmp.eq.s32.totalorder %s373, 0
    %s376 = sadd.s32 %s375, 1
    %s377 = scalar_select %p374, %s375, %s376
    %p380 = pneg %p374
    %p381 = scmp.eq.s32.totalorder %s20, 1
    %p382 = por %p380, %p381
    %p383 = scmp.ne.s32.totalorder %s375, %s378
    %p384 = scmp.eq.s32.totalorder %s20, 0
    %p385 = por %p383, %p384
    %p386 = scmp.ne.s32.totalorder %s375, %s378
    %p387 = scmp.eq.s32.totalorder %s25, 1
    %p388 = por %p386, %p387
    %p389 = scmp.ne.s32.totalorder %s378, %s379
    %p390 = scmp.eq.s32.totalorder %s25, 0
    %p391 = por %p389, %p390
    %p392 = scmp.ne.s32.totalorder %s378, %s379
    %p393 = scmp.eq.s32.totalorder %s26, 1
    %p394 = por %p392, %p393
    %p396 = scmp.ne.s32.totalorder %s379, %s395
    %p397 = scmp.eq.s32.totalorder %s26, 0
    %p398 = por %p396, %p397
    %s399 = ssub.s32 %s27, %s39
    %p400 = scmp.eq.s32.totalorder %s399, 0
    %s402 = sadd.s32 %s401, 1
    %s403 = scalar_select %p400, %s401, %s402
    %p406 = pneg %p400
    %p407 = scmp.eq.s32.totalorder %s20, 1
    %p408 = por %p406, %p407
    %p409 = scmp.ne.s32.totalorder %s401, %s404
    %p410 = scmp.eq.s32.totalorder %s20, 0
    %p411 = por %p409, %p410
    %p412 = scmp.ne.s32.totalorder %s401, %s404
    %p413 = scmp.eq.s32.totalorder %s25, 1
    %p414 = por %p412, %p413
    %p415 = scmp.ne.s32.totalorder %s404, %s405
    %p416 = scmp.eq.s32.totalorder %s25, 0
    %p417 = por %p415, %p416
    %p418 = scmp.ne.s32.totalorder %s404, %s405
    %p419 = scmp.eq.s32.totalorder %s26, 1
    %p420 = por %p418, %p419
    %p422 = scmp.ne.s32.totalorder %s405, %s421
    %p423 = scmp.eq.s32.totalorder %s26, 0
    %p424 = por %p422, %p423
    %p425 = scmp.le.s32.totalorder 1, %s20
    %p426 = scmp.lt.s32.totalorder %s20, 3
    %p427 = pnand %p425, %p426
    %p428 = pneg %p427
    // Predicated region
    $region9: #{clip_forward.4} parent=5 // pred_check
      _
    $region10: #{clip_forward.4} parent=5 // pred_check_branch
      %430 = sbr.rel (%p427) target = $region12
    $region11: #{clip_forward.4} parent=5 // pred_region
      %s431 = ssub.s32 %s20, 1
      // Predicated region
      $region13: #{clip_forward.4} parent=11 // pred_check
        %p432 = pneg %p58
      $region14: #{clip_forward.4} parent=11 // pred_check_branch
        %434 = sbr.rel (%p432) target = $region16
      $region15: #{clip_forward.4} parent=11 // pred_region
        %s435 = smul.u32 2, %s29
        %p436 = scmp.lt.s32.totalorder %s435, 1
        %s437 = scalar_select %p436, %s435, 1
        %s438 = smul.addr %s437, 8
        %s439 = scalar_lea.vmem %s0, %s438
        %s440 = smul.u32 2, %s29
      $region16: #{clip_forward.4} parent=11 // pred_fallthru
        _
      // Predicated region
      $region17: #{clip_forward.4} parent=11 // pred_check
        %p441 = pneg %p79
      $region18: #{clip_forward.4} parent=11 // pred_check_branch
        %443 = sbr.rel (%p441) target = $region20
      $region19: #{clip_forward.4} parent=11 // pred_region
        _
      $region20: #{clip_forward.4} parent=11 // pred_fallthru
        _
    $region12: #{clip_forward.4} parent=5 // pred_fallthru
      _
    %p444 = scmp.lt.s32.totalorder %s20, 2
    // Predicated region
    $region21: #{clip_forward.4} parent=5 // pred_check
      %p445 = pneg %p444
    $region22: #{clip_forward.4} parent=5 // pred_check_branch
      %447 = sbr.rel (%p445) target = $region24
    $region23: #{clip_forward.4} parent=5 // pred_region
      // Predicated region
      $region25: #{clip_forward.4} parent=23 // pred_check
        %p448 = pneg %p99
      $region26: #{clip_forward.4} parent=23 // pred_check_branch
        %450 = sbr.rel (%p448) target = $region28
      $region27: #{clip_forward.4} parent=23 // pred_region
        %p451 = scmp.lt.s32.totalorder %s28, 1
        %s452 = scalar_select %p451, %s28, 1
        %s453 = scalar_lea.vmem %s2, %s452
      $region28: #{clip_forward.4} parent=23 // pred_fallthru
        _
      // Predicated region
      $region29: #{clip_forward.4} parent=23 // pred_check
        %p454 = pneg %p125
      $region30: #{clip_forward.4} parent=23 // pred_check_branch
        %456 = sbr.rel (%p454) target = $region32
      $region31: #{clip_forward.4} parent=23 // pred_region
        %p457 = scmp.lt.s32.totalorder %s28, 1
        %s458 = scalar_select %p457, %s28, 1
        %s459 = scalar_lea.vmem %s3, %s458
      $region32: #{clip_forward.4} parent=23 // pred_fallthru
        _
      // Predicated region
      $region33: #{clip_forward.4} parent=23 // pred_check
        %p460 = pneg %p151
      $region34: #{clip_forward.4} parent=23 // pred_check_branch
        %462 = sbr.rel (%p460) target = $region36
      $region35: #{clip_forward.4} parent=23 // pred_region
        %p463 = scmp.lt.s32.totalorder %s28, 1
        %s464 = scalar_select %p463, %s28, 1
        %s465 = smul.addr %s464, 4
        %s466 = smul.addr %s465, 4
        %s467 = scalar_lea.vmem %s4, %s466
      $region36: #{clip_forward.4} parent=23 // pred_fallthru
        _
      // Predicated region
      $region37: #{clip_forward.4} parent=23 // pred_check
        %p468 = pneg %p177
      $region38: #{clip_forward.4} parent=23 // pred_check_branch
        %470 = sbr.rel (%p468) target = $region40
      $region39: #{clip_forward.4} parent=23 // pred_region
        %p471 = scmp.lt.s32.totalorder %s28, 1
        %s472 = scalar_select %p471, %s28, 1
        %s473 = scalar_lea.vmem %s5, %s472
      $region40: #{clip_forward.4} parent=23 // pred_fallthru
        _
      // Predicated region
      $region41: #{clip_forward.4} parent=23 // pred_check
        %p474 = pneg %p203
      $region42: #{clip_forward.4} parent=23 // pred_check_branch
        %476 = sbr.rel (%p474) target = $region44
      $region43: #{clip_forward.4} parent=23 // pred_region
        %p477 = scmp.lt.s32.totalorder %s28, 1
        %s478 = scalar_select %p477, %s28, 1
        %s479 = smul.addr %s478, 4
        %s480 = smul.addr %s479, 4
        %s481 = scalar_lea.vmem %s6, %s480
      $region44: #{clip_forward.4} parent=23 // pred_fallthru
        _
      // Predicated region
      $region45: #{clip_forward.4} parent=23 // pred_check
        %p482 = pneg %p229
      $region46: #{clip_forward.4} parent=23 // pred_check_branch
        %484 = sbr.rel (%p482) target = $region48
      $region47: #{clip_forward.4} parent=23 // pred_region
        %p485 = scmp.lt.s32.totalorder %s28, 1
        %s486 = scalar_select %p485, %s28, 1
        %s487 = scalar_lea.vmem %s7, %s486
      $region48: #{clip_forward.4} parent=23 // pred_fallthru
        _
      // Predicated region
      $region49: #{clip_forward.4} parent=23 // pred_check
        %p488 = pneg %p255
      $region50: #{clip_forward.4} parent=23 // pred_check_branch
        %490 = sbr.rel (%p488) target = $region52
      $region51: #{clip_forward.4} parent=23 // pred_region
        %p491 = scmp.lt.s32.totalorder %s28, 1
        %s492 = scalar_select %p491, %s28, 1
        %s493 = scalar_lea.vmem %s8, %s492
      $region52: #{clip_forward.4} parent=23 // pred_fallthru
        _
      // Predicated region
      $region53: #{clip_forward.4} parent=23 // pred_check
        %p494 = pneg %p281
      $region54: #{clip_forward.4} parent=23 // pred_check_branch
        %496 = sbr.rel (%p494) target = $region56
      $region55: #{clip_forward.4} parent=23 // pred_region
        %p497 = scmp.lt.s32.totalorder %s28, 1
        %s498 = scalar_select %p497, %s28, 1
        %s499 = scalar_lea.vmem %s9, %s498
      $region56: #{clip_forward.4} parent=23 // pred_fallthru
        _
      // Predicated region
      $region57: #{clip_forward.4} parent=23 // pred_check
        %p500 = pneg %p307
      $region58: #{clip_forward.4} parent=23 // pred_check_branch
        %502 = sbr.rel (%p500) target = $region60
      $region59: #{clip_forward.4} parent=23 // pred_region
        %p503 = scmp.lt.s32.totalorder %s28, 1
        %s504 = scalar_select %p503, %s28, 1
        %s505 = smul.addr %s504, 4
        %s506 = smul.addr %s505, 4
        %s507 = scalar_lea.vmem %s10, %s506
      $region60: #{clip_forward.4} parent=23 // pred_fallthru
        _
      // Predicated region
      $region61: #{clip_forward.4} parent=23 // pred_check
        %p508 = pneg %p333
      $region62: #{clip_forward.4} parent=23 // pred_check_branch
        %510 = sbr.rel (%p508) target = $region64
      $region63: #{clip_forward.4} parent=23 // pred_region
        %p511 = scmp.lt.s32.totalorder %s28, 1
        %s512 = scalar_select %p511, %s28, 1
        %s513 = scalar_lea.vmem %s11, %s512
      $region64: #{clip_forward.4} parent=23 // pred_fallthru
        _
      // Predicated region
      $region65: #{clip_forward.4} parent=23 // pred_check
        %p514 = pneg %p359
      $region66: #{clip_forward.4} parent=23 // pred_check_branch
        %516 = sbr.rel (%p514) target = $region68
      $region67: #{clip_forward.4} parent=23 // pred_region
        %p517 = scmp.lt.s32.totalorder %s28, 1
        %s518 = scalar_select %p517, %s28, 1
        %s519 = smul.addr %s518, 16
        %s520 = smul.addr %s519, 4
        %s521 = scalar_lea.vmem %s12, %s520
      $region68: #{clip_forward.4} parent=23 // pred_fallthru
        _
      // Predicated region
      $region69: #{clip_forward.4} parent=23 // pred_check
        %p522 = pneg %p385
      $region70: #{clip_forward.4} parent=23 // pred_check_branch
        %524 = sbr.rel (%p522) target = $region72
      $region71: #{clip_forward.4} parent=23 // pred_region
        %p525 = scmp.lt.s32.totalorder %s28, 1
        %s526 = scalar_select %p525, %s28, 1
        %s527 = scalar_lea.vmem %s13, %s526
      $region72: #{clip_forward.4} parent=23 // pred_fallthru
        _
    $region24: #{clip_forward.4} parent=5 // pred_fallthru
      _
    %p528 = scmp.le.s32.totalorder 1, %s20
    %p529 = scmp.lt.s32.totalorder %s20, 3
    %p530 = pnand %p528, %p529
    %p531 = pneg %p530
    // Predicated region
    $region73: #{clip_forward.4} parent=5 // pred_check
      _
    $region74: #{clip_forward.4} parent=5 // pred_check_branch
      %533 = sbr.rel (%p530) target = $region76
    $region75: #{clip_forward.4} parent=5 // pred_region
      %s534 = ssub.s32 %s20, 1
      %s535 = smul.u32 2, %s29
      %p536 = scmp.lt.s32.totalorder %s535, 1
      %s537 = scalar_select %p536, %s535, 1
      %s538 = smul.addr %s537, 8
      %s539 = scalar_lea.vmem %s0, %s538
      %p540 = pneg %p58
      %p541 = pneg %p55
      %p542 = pneg %p79
      %p543 = pneg %p76
      %p544 = scmp.lt.s32.totalorder %s30, 1
      %s545 = scalar_select %p544, %s30, 1
      %s546 = scalar_lea.vmem %s2, %s545
      %p547 = pneg %p105
      %p548 = pneg %p102
      %p549 = scmp.lt.s32.totalorder %s30, 1
      %s550 = scalar_select %p549, %s30, 1
      %s551 = scalar_lea.vmem %s3, %s550
      %p552 = pneg %p131
      %p553 = pneg %p128
      %p554 = scmp.lt.s32.totalorder %s30, 1
      %s555 = scalar_select %p554, %s30, 1
      %s556 = smul.addr %s555, 4
      %s557 = smul.addr %s556, 4
      %s558 = scalar_lea.vmem %s4, %s557
      %p559 = pneg %p157
      %p560 = pneg %p154
      %p561 = scmp.lt.s32.totalorder %s30, 1
      %s562 = scalar_select %p561, %s30, 1
      %s563 = scalar_lea.vmem %s5, %s562
      %p564 = pneg %p183
      %p565 = pneg %p180
      %p566 = scmp.lt.s32.totalorder %s30, 1
      %s567 = scalar_select %p566, %s30, 1
      %s568 = smul.addr %s567, 4
      %s569 = smul.addr %s568, 4
      %s570 = scalar_lea.vmem %s6, %s569
      %p571 = pneg %p209
      %p572 = pneg %p206
      %p573 = scmp.lt.s32.totalorder %s30, 1
      %s574 = scalar_select %p573, %s30, 1
      %s575 = scalar_lea.vmem %s7, %s574
      %p576 = pneg %p235
      %p577 = pneg %p232
      %p578 = scmp.lt.s32.totalorder %s30, 1
      %s579 = scalar_select %p578, %s30, 1
      %s580 = scalar_lea.vmem %s8, %s579
      %p581 = pneg %p261
      %p582 = pneg %p258
      %p583 = scmp.lt.s32.totalorder %s30, 1
      %s584 = scalar_select %p583, %s30, 1
      %s585 = scalar_lea.vmem %s9, %s584
      %p586 = pneg %p287
      %p587 = pneg %p284
      %p588 = scmp.lt.s32.totalorder %s30, 1
      %s589 = scalar_select %p588, %s30, 1
      %s590 = smul.addr %s589, 4
      %s591 = smul.addr %s590, 4
      %s592 = scalar_lea.vmem %s10, %s591
      %p593 = pneg %p313
      %p594 = pneg %p310
      %p595 = scmp.lt.s32.totalorder %s30, 1
      %s596 = scalar_select %p595, %s30, 1
      %s597 = scalar_lea.vmem %s11, %s596
      %p598 = pneg %p339
      %p599 = pneg %p336
      %p600 = scmp.lt.s32.totalorder %s30, 1
      %s601 = scalar_select %p600, %s30, 1
      %s602 = smul.addr %s601, 16
      %s603 = smul.addr %s602, 4
      %s604 = scalar_lea.vmem %s12, %s603
      %p605 = pneg %p365
      %p606 = pneg %p362
      %p607 = scmp.lt.s32.totalorder %s30, 1
      %s608 = scalar_select %p607, %s30, 1
      %s609 = scalar_lea.vmem %s13, %s608
      %p610 = pneg %p391
      %p611 = pneg %p388
      %p612 = pneg %p417
      %p613 = pneg %p414
      %s614 = smul.u32 2, %s29
      %p615 = scmp.lt.s32.totalorder %s614, 1
      %s616 = scalar_select %p615, %s614, 1
      %s617 = smul.addr %s616, 8
      %s618 = scalar_lea.vmem %s14, %s617
      %s619 = smul.u32 2, %s29
      %p620 = scmp.lt.s32.totalorder %s619, 1
      %s621 = scalar_select %p620, %s619, 1
      %s622 = smul.addr %s621, 8
      %s623 = scalar_lea.vmem %s0, %s622
      %s624 = smul.u32 2, %s29
      %p625 = scmp.lt.s32.totalorder %s30, 1
      %s626 = scalar_select %p625, %s30, 1
      %s627 = scalar_lea.vmem %s2, %s626
      %p628 = scmp.lt.s32.totalorder %s30, 1
      %s629 = scalar_select %p628, %s30, 1
      %s630 = scalar_lea.vmem %s3, %s629
      %p631 = scmp.lt.s32.totalorder %s30, 1
      %s632 = scalar_select %p631, %s30, 1
      %s633 = smul.addr %s632, 4
      %s634 = smul.addr %s633, 4
      %s635 = scalar_lea.vmem %s4, %s634
      %p636 = scmp.lt.s32.totalorder %s30, 1
      %s637 = scalar_select %p636, %s30, 1
      %s638 = scalar_lea.vmem %s5, %s637
      %p639 = scmp.lt.s32.totalorder %s30, 1
      %s640 = scalar_select %p639, %s30, 1
      %s641 = smul.addr %s640, 4
      %s642 = smul.addr %s641, 4
      %s643 = scalar_lea.vmem %s6, %s642
      %p644 = scmp.lt.s32.totalorder %s30, 1
      %s645 = scalar_select %p644, %s30, 1
      %s646 = scalar_lea.vmem %s7, %s645
      %p647 = scmp.lt.s32.totalorder %s30, 1
      %s648 = scalar_select %p647, %s30, 1
      %s649 = scalar_lea.vmem %s8, %s648
      %p650 = scmp.lt.s32.totalorder %s30, 1
      %s651 = scalar_select %p650, %s30, 1
      %s652 = scalar_lea.vmem %s9, %s651
      %p653 = scmp.lt.s32.totalorder %s30, 1
      %s654 = scalar_select %p653, %s30, 1
      %s655 = smul.addr %s654, 4
      %s656 = smul.addr %s655, 4
      %s657 = scalar_lea.vmem %s10, %s656
      %p658 = scmp.lt.s32.totalorder %s30, 1
      %s659 = scalar_select %p658, %s30, 1
      %s660 = scalar_lea.vmem %s11, %s659
      %p661 = scmp.lt.s32.totalorder %s30, 1
      %s662 = scalar_select %p661, %s30, 1
      %s663 = smul.addr %s662, 16
      %s664 = smul.addr %s663, 4
      %s665 = scalar_lea.vmem %s12, %s664
      %p666 = scmp.lt.s32.totalorder %s30, 1
      %s667 = scalar_select %p666, %s30, 1
      %s668 = scalar_lea.vmem %s13, %s667
      %s669 = smul.u32 2, %s29
      %p670 = scmp.lt.s32.totalorder %s669, 1
      %s671 = scalar_select %p670, %s669, 1
      %s672 = smul.addr %s671, 8
      %s673 = scalar_lea.vmem %s14, %s672
      %s674 = smul.u32 2, %s29
      %p676 = scmp.eq.s32.totalorder %s30, 0
      // Predicated region
      $region77: #{clip_forward.4} parent=75 // pred_check
        %p677 = pneg %p676
      $region78: #{clip_forward.4} parent=75 // pred_check_branch
        %679 = sbr.rel (%p677) target = $region80
      $region79: #{clip_forward.4} parent=75 // pred_region
        %v680 = vld [vmem:[%s623] sm:$0xff]
        %v681 = vld [vmem:[%s623 + $0x8] sm:$0xff]
        %vm682 = vcmask 261120
        %683 = vst.msk [vmem:[%s673] sm:$0xff] %vm682, %v680
        %684 = vst.msk [vmem:[%s673 + $0x8] sm:$0xff] %vm682, %v681
      $region80: #{clip_forward.4} parent=75 // pred_fallthru
        _
      %v685 = vld [vmem:[%s673] sm:$0xff]
      %v686 = vld [vmem:[%s673 + $0x8] sm:$0xff]
      %v687 = vld [vmem:[%s627] sm:$0x1]
      %v688 = vld [vmem:[%s630] sm:$0x1]
      %vm689 = vcmask 261120
      %v690 = vsel %vm689, %v685, 0.0
      %691 = vadd.xlane.f32.xlu0 %v690
      %v692 = vpop.xlane.xlu0 %691
      %v693 = vsel %vm689, %v686, 0.0
      %694 = vadd.xlane.f32.xlu0 %v693
      %v695 = vpop.xlane.xlu0 %694
      %v696 = vrcp.pop 32.0
      %v697 = vmul.f32 %v692, %v696
      %v698 = vmul.f32 %v695, %v696
      %v699 = vsub.f32 %v685, %v697
      %v700 = vsub.f32 %v686, %v698
      %v701 = vmul.f32 %v699, %v699
      %v702 = vmul.f32 %v700, %v700
      %v703 = vsel %vm689, %v701, 0.0
      %704 = vadd.xlane.f32.xlu0 %v703
      %v705 = vpop.xlane.xlu0 %704
      %v706 = vsel %vm689, %v702, 0.0
      %707 = vadd.xlane.f32.xlu0 %v706
      %v708 = vpop.xlane.xlu0 %707
      %v709 = vmul.f32 %v705, %v696
      %v710 = vmul.f32 %v708, %v696
      %v711 = vadd.f32 %v709, 1e-05
      %v712 = vadd.f32 %v710, 1e-05
      %v713 = vrsqrt.pop %v711
      %v714 = vrsqrt.pop %v712
      %v715 = vmul.f32 %v699, %v713
      %v716 = vmul.f32 %v700, %v714
      %v718 = vlaneseq
      %v719 = vshrl.u32 %v718, 7
      %v720 = vsub.s32 0, %v719
      %v721 = vrot.slane %v687, %v720
      %v723 = vmul.f32 %v715, %v721
      %v724 = vmul.f32 %v716, %v721
      %v726 = vlaneseq
      %v727 = vshrl.u32 %v726, 7
      %v728 = vsub.s32 0, %v727
      %v729 = vrot.slane %v688, %v728
      %v731 = vadd.f32 %v723, %v729
      %v732 = vadd.f32 %v724, %v729
      %v733 = vpack.c.bf16 %v732, %v731
      %v734 = vld [vmem:[%s635] sm:$0xf]
      %v735 = vld [vmem:[%s635 + $0x4] sm:$0xf]
      %v736 = vld [vmem:[%s635 + $0x8] sm:$0xf]
      %v737 = vld [vmem:[%s635 + $0xc] sm:$0xf]
      %v738 = vld [vmem:[%s638] sm:$0x1]
      %v740 = vlaneseq
      %v741 = vshrl.u32 %v740, 7
      %v742 = vsub.s32 0, %v741
      %v743 = vrot.slane %v738, %v742
      %v749 = vunpack.c.l.b16 %v734
      %v750 = vunpack.c.l.b16 %v735
      %v751 = vunpack.c.l.b16 %v736
      %v752 = vunpack.c.l.b16 %v737
      %v753 = vpack.c.b16 %v750, %v749
      %v754 = vpack.c.b16 %v752, %v751
      %v758 = vsel %vm689, %v733, 0
      %760 = vmatprep.subr.bf16.mxu0 0
      %761 = vmatpush1.bf16.msra.mxu0 %v753
      %762 = vmatprep.subr.bf16.mxu0 0
      %763 = vmatpush1.bf16.msra.mxu0 %v754
      %764 = vmatprep.subr.bf16.mxu0 0
      %765 = vmatpush1.bf16.msra.mxu0 0
      %766 = vmatprep.subr.bf16.mxu0 0
      %767 = vmatpush1.bf16.msra.mxu0 0
      %768 = vmatprep.subr.bf16.mxu0 0
      %769 = vmatpush1.bf16.msra.mxu0 0
      %770 = vmatprep.subr.bf16.mxu0 0
      %771 = vmatpush1.bf16.msra.mxu0 0
      %772 = vmatprep.subr.bf16.mxu0 0
      %773 = vmatpush1.bf16.msra.mxu0 0
      %774 = vmatprep.subr.bf16.mxu0 0
      %775 = vmatpush1.bf16.msra.mxu0 0
      %776 = vmatprep.subr.bf16.mxu0 0
      %777 = vmatpush1.bf16.msra.mxu0 0
      %778 = vmatprep.subr.bf16.mxu0 0
      %779 = vmatpush1.bf16.msra.mxu0 0
      %780 = vmatprep.subr.bf16.mxu0 0
      %781 = vmatpush1.bf16.msra.mxu0 0
      %782 = vmatprep.subr.bf16.mxu0 0
      %783 = vmatpush1.bf16.msra.mxu0 0
      %784 = vmatprep.subr.bf16.mxu0 0
      %785 = vmatpush1.bf16.msra.mxu0 0
      %786 = vmatprep.subr.bf16.mxu0 0
      %787 = vmatpush1.bf16.msra.mxu0 0
      %788 = vmatprep.subr.bf16.mxu0 0
      %789 = vmatpush1.bf16.msra.mxu0 0
      %790 = vmatprep.subr.bf16.mxu0 0
      %791 = vmatpush1.bf16.msra.mxu0 0
      %792 = vmatprep.mubr.bf16.mxu0 0
      %793 = vmatmul.mubr.bf16.gmra.mrb[0].mxu0 %v758
      %v794 = vpop.f32.mrb[0].mxu0
      %v795 = vadd.f32 %v743, %v794
      %v796 = vpop.f32.mrb[0].mxu0
      %v797 = vpop.f32.mrb[0].mxu0
      %v798 = vadd.f32 %v743, %v797
      %v799 = vpop.f32.mrb[0].mxu0
      %800 = vdwg.mxu0
      %v801 = vpack.c.bf16 %v798, %v795
      %v802 = vld [vmem:[%s1] sm:$0xff]
      %v804 = vunpack.c.l.b16 %v801
      %v805 = vunpack.c.h.b16 %v801
      %v806 = vpack.c.b16 %v804, %v804
      %v807 = vpack.c.b16 %v805, %v805
      %808 = vrot.lane.b32.xlu0 %v806, 96
      %v809 = vpop.permute.xlu0 %808
      %vm810 = vcmask 64512
      %v812 = vsel %vm810, %v806, 0
      %v815 = vsel %vm810, %v809, 0
      %817 = vmatprep.subr.bf16.mxu0 0
      %818 = vmatpush1.bf16.xpose.msra.mxu0 %v815
      %819 = vmatprep.subr.bf16.mxu0 0
      %820 = vmatpush1.bf16.xpose.msra.mxu0 0
      %821 = vmatprep.subr.bf16.mxu0 0
      %822 = vmatpush1.bf16.xpose.msra.mxu0 0
      %823 = vmatprep.subr.bf16.mxu0 0
      %824 = vmatpush1.bf16.xpose.msra.mxu0 0
      %825 = vmatprep.subr.bf16.mxu0 0
      %826 = vmatpush1.bf16.xpose.msra.mxu0 0
      %827 = vmatprep.subr.bf16.mxu0 0
      %828 = vmatpush1.bf16.xpose.msra.mxu0 0
      %829 = vmatprep.subr.bf16.mxu0 0
      %830 = vmatpush1.bf16.xpose.msra.mxu0 0
      %831 = vmatprep.subr.bf16.mxu0 0
      %832 = vmatpush1.bf16.xpose.msra.mxu0 0
      %833 = vmatprep.subr.bf16.mxu0 0
      %834 = vmatpush1.bf16.xpose.msra.mxu0 0
      %835 = vmatprep.subr.bf16.mxu0 0
      %836 = vmatpush1.bf16.xpose.msra.mxu0 0
      %837 = vmatprep.subr.bf16.mxu0 0
      %838 = vmatpush1.bf16.xpose.msra.mxu0 0
      %839 = vmatprep.subr.bf16.mxu0 0
      %840 = vmatpush1.bf16.xpose.msra.mxu0 0
      %841 = vmatprep.subr.bf16.mxu0 0
      %842 = vmatpush1.bf16.xpose.msra.mxu0 0
      %843 = vmatprep.subr.bf16.mxu0 0
      %844 = vmatpush1.bf16.xpose.msra.mxu0 0
      %845 = vmatprep.subr.bf16.mxu0 0
      %846 = vmatpush1.bf16.xpose.msra.mxu0 0
      %847 = vmatprep.subr.bf16.mxu0 0
      %848 = vmatpush1.bf16.xpose.msra.mxu0 0
      %849 = vmatprep.mubr.bf16.mxu0 0
      %850 = vmatmul.mubr.bf16.gmra.mrb[0].mxu0 %v812
      %v851 = vpop.f32.mrb[0].mxu0
      %v852 = vadd.f32 %v802, %v851
      %v853 = vpop.f32.mrb[0].mxu0
      %v854 = vpop.f32.mrb[0].mxu0
      %v855 = vpop.f32.mrb[0].mxu0
      %856 = vdwg.mxu0
      %857 = vrot.lane.b32.xlu0 %v807, 96
      %v858 = vpop.permute.xlu0 %857
      %v860 = vsel %vm810, %v807, 0
      %v863 = vsel %vm810, %v858, 0
      %865 = vmatprep.subr.bf16.mxu0 0
      %866 = vmatpush1.bf16.xpose.msra.mxu0 %v863
      %867 = vmatprep.subr.bf16.mxu0 0
      %868 = vmatpush1.bf16.xpose.msra.mxu0 0
      %869 = vmatprep.subr.bf16.mxu0 0
      %870 = vmatpush1.bf16.xpose.msra.mxu0 0
      %871 = vmatprep.subr.bf16.mxu0 0
      %872 = vmatpush1.bf16.xpose.msra.mxu0 0
      %873 = vmatprep.subr.bf16.mxu0 0
      %874 = vmatpush1.bf16.xpose.msra.mxu0 0
      %875 = vmatprep.subr.bf16.mxu0 0
      %876 = vmatpush1.bf16.xpose.msra.mxu0 0
      %877 = vmatprep.subr.bf16.mxu0 0
      %878 = vmatpush1.bf16.xpose.msra.mxu0 0
      %879 = vmatprep.subr.bf16.mxu0 0
      %880 = vmatpush1.bf16.xpose.msra.mxu0 0
      %881 = vmatprep.subr.bf16.mxu0 0
      %882 = vmatpush1.bf16.xpose.msra.mxu0 0
      %883 = vmatprep.subr.bf16.mxu0 0
      %884 = vmatpush1.bf16.xpose.msra.mxu0 0
      %885 = vmatprep.subr.bf16.mxu0 0
      %886 = vmatpush1.bf16.xpose.msra.mxu0 0
      %887 = vmatprep.subr.bf16.mxu0 0
      %888 = vmatpush1.bf16.xpose.msra.mxu0 0
      %889 = vmatprep.subr.bf16.mxu0 0
      %890 = vmatpush1.bf16.xpose.msra.mxu0 0
      %891 = vmatprep.subr.bf16.mxu0 0
      %892 = vmatpush1.bf16.xpose.msra.mxu0 0
      %893 = vmatprep.subr.bf16.mxu0 0
      %894 = vmatpush1.bf16.xpose.msra.mxu0 0
      %895 = vmatprep.subr.bf16.mxu0 0
      %896 = vmatpush1.bf16.xpose.msra.mxu0 0
      %897 = vmatprep.mubr.bf16.mxu0 0
      %898 = vmatmul.mubr.bf16.gmra.mrb[0].mxu0 %v860
      %v899 = vpop.f32.mrb[0].mxu0
      %v900 = vadd.f32 %v802, %v899
      %v901 = vpop.f32.mrb[0].mxu0
      %v902 = vpop.f32.mrb[0].mxu0
      %v903 = vpop.f32.mrb[0].mxu0
      %904 = vdwg.mxu0
      %v905 = vsel %vm810, %v852, -inf
      %906 = vmax.xlane.f32.xlu0 %v905
      %v907 = vpop.xlane.xlu0 %906
      %v908 = vsel %vm810, %v900, -inf
      %909 = vmax.xlane.f32.xlu0 %v908
      %v910 = vpop.xlane.xlu0 %909
      %v911 = vsub.f32 %v852, %v907
      %v912 = vsub.f32 %v900, %v910
      %v913 = vmul.f32 %v911, 1.442695
      %v914 = vpow.pop %v913
      %v915 = vmul.f32 %v912, 1.442695
      %v916 = vpow.pop %v915
      %v917 = vsel %vm810, %v914, 0.0
      %918 = vadd.xlane.f32.xlu0 %v917
      %v919 = vpop.xlane.xlu0 %918
      %v920 = vsel %vm810, %v916, 0.0
      %921 = vadd.xlane.f32.xlu0 %v920
      %v922 = vpop.xlane.xlu0 %921
      %v923 = vrcp.pop %v919
      %v924 = vrcp.pop %v922
      %v925 = vmul.f32 %v914, %v923
      %v926 = vmul.f32 %v916, %v924
      %v927 = vpack.c.bf16 %v925, %v925
      %v928 = vpack.c.bf16 %v926, %v926
      %929 = vrot.lane.b32.xlu0 %v806, 64
      %v930 = vpop.permute.xlu0 %929
      %v932 = vsel %vm810, %v927, 0
      %vm934 = vcmask 1043456
      %v936 = vsel %vm934, %v930, 0
      %938 = vmatprep.subr.bf16.mxu0 0
      %939 = vmatpush1.bf16.msra.mxu0 %v936
      %940 = vmatprep.subr.bf16.mxu0 0
      %941 = vmatpush1.bf16.msra.mxu0 0
      %942 = vmatprep.subr.bf16.mxu0 0
      %943 = vmatpush1.bf16.msra.mxu0 0
      %944 = vmatprep.subr.bf16.mxu0 0
      %945 = vmatpush1.bf16.msra.mxu0 0
      %946 = vmatprep.subr.bf16.mxu0 0
      %947 = vmatpush1.bf16.msra.mxu0 0
      %948 = vmatprep.subr.bf16.mxu0 0
      %949 = vmatpush1.bf16.msra.mxu0 0
      %950 = vmatprep.subr.bf16.mxu0 0
      %951 = vmatpush1.bf16.msra.mxu0 0
      %952 = vmatprep.subr.bf16.mxu0 0
      %953 = vmatpush1.bf16.msra.mxu0 0
      %954 = vmatprep.subr.bf16.mxu0 0
      %955 = vmatpush1.bf16.msra.mxu0 0
      %956 = vmatprep.subr.bf16.mxu0 0
      %957 = vmatpush1.bf16.msra.mxu0 0
      %958 = vmatprep.subr.bf16.mxu0 0
      %959 = vmatpush1.bf16.msra.mxu0 0
      %960 = vmatprep.subr.bf16.mxu0 0
      %961 = vmatpush1.bf16.msra.mxu0 0
      %962 = vmatprep.subr.bf16.mxu0 0
      %963 = vmatpush1.bf16.msra.mxu0 0
      %964 = vmatprep.subr.bf16.mxu0 0
      %965 = vmatpush1.bf16.msra.mxu0 0
      %966 = vmatprep.subr.bf16.mxu0 0
      %967 = vmatpush1.bf16.msra.mxu0 0
      %968 = vmatprep.subr.bf16.mxu0 0
      %969 = vmatpush1.bf16.msra.mxu0 0
      %970 = vmatprep.mubr.bf16.mxu0 0
      %971 = vmatmul.mubr.bf16.gmra.mrb[0].mxu0 %v932
      %v972 = vpop.f32.mrb[0].mxu0
      %v973 = vadd.f32 0.0, %v972
      %v974 = vpop.f32.mrb[0].mxu0
      %v975 = vpop.f32.mrb[0].mxu0
      %v976 = vpop.f32.mrb[0].mxu0
      %977 = vdwg.mxu0
      %978 = vrot.lane.b32.xlu0 %v807, 64
      %v979 = vpop.permute.xlu0 %978
      %v981 = vsel %vm810, %v928, 0
      %v984 = vsel %vm934, %v979, 0
      %986 = vmatprep.subr.bf16.mxu0 0
      %987 = vmatpush1.bf16.msra.mxu0 %v984
      %988 = vmatprep.subr.bf16.mxu0 0
      %989 = vmatpush1.bf16.msra.mxu0 0
      %990 = vmatprep.subr.bf16.mxu0 0
      %991 = vmatpush1.bf16.msra.mxu0 0
      %992 = vmatprep.subr.bf16.mxu0 0
      %993 = vmatpush1.bf16.msra.mxu0 0
      %994 = vmatprep.subr.bf16.mxu0 0
      %995 = vmatpush1.bf16.msra.mxu0 0
      %996 = vmatprep.subr.bf16.mxu0 0
      %997 = vmatpush1.bf16.msra.mxu0 0
      %998 = vmatprep.subr.bf16.mxu0 0
      %999 = vmatpush1.bf16.msra.mxu0 0
      %1000 = vmatprep.subr.bf16.mxu0 0
      %1001 = vmatpush1.bf16.msra.mxu0 0
      %1002 = vmatprep.subr.bf16.mxu0 0
      %1003 = vmatpush1.bf16.msra.mxu0 0
      %1004 = vmatprep.subr.bf16.mxu0 0
      %1005 = vmatpush1.bf16.msra.mxu0 0
      %1006 = vmatprep.subr.bf16.mxu0 0
      %1007 = vmatpush1.bf16.msra.mxu0 0
      %1008 = vmatprep.subr.bf16.mxu0 0
      %1009 = vmatpush1.bf16.msra.mxu0 0
      %1010 = vmatprep.subr.bf16.mxu0 0
      %1011 = vmatpush1.bf16.msra.mxu0 0
      %1012 = vmatprep.subr.bf16.mxu0 0
      %1013 = vmatpush1.bf16.msra.mxu0 0
      %1014 = vmatprep.subr.bf16.mxu0 0
      %1015 = vmatpush1.bf16.msra.mxu0 0
      %1016 = vmatprep.subr.bf16.mxu0 0
      %1017 = vmatpush1.bf16.msra.mxu0 0
      %1018 = vmatprep.mubr.bf16.mxu0 0
      %1019 = vmatmul.mubr.bf16.gmra.mrb[0].mxu0 %v981
      %v1020 = vpop.f32.mrb[0].mxu0
      %v1021 = vadd.f32 0.0, %v1020
      %v1022 = vpop.f32.mrb[0].mxu0
      %v1023 = vpop.f32.mrb[0].mxu0
      %v1024 = vpop.f32.mrb[0].mxu0
      %1025 = vdwg.mxu0
      %1026 = vrot.lane.b32.xlu0 %v806, 120
      %v1027 = vpop.permute.xlu0 %1026
      %1028 = vrot.lane.b32.xlu0 %v806, 88
      %v1029 = vpop.permute.xlu0 %1028
      %v1031 = vsel %vm810, %v1027, 0
      %v1034 = vsel %vm810, %v1029, 0
      %1036 = vmatprep.subr.bf16.mxu0 0
      %1037 = vmatpush1.bf16.xpose.msra.mxu0 %v1034
      %1038 = vmatprep.subr.bf16.mxu0 0
      %1039 = vmatpush1.bf16.xpose.msra.mxu0 0
      %1040 = vmatprep.subr.bf16.mxu0 0
      %1041 = vmatpush1.bf16.xpose.msra.mxu0 0
      %1042 = vmatprep.subr.bf16.mxu0 0
      %1043 = vmatpush1.bf16.xpose.msra.mxu0 0
      %1044 = vmatprep.subr.bf16.mxu0 0
      %1045 = vmatpush1.bf16.xpose.msra.mxu0 0
      %1046 = vmatprep.subr.bf16.mxu0 0
      %1047 = vmatpush1.bf16.xpose.msra.mxu0 0
      %1048 = vmatprep.subr.bf16.mxu0 0
      %1049 = vmatpush1.bf16.xpose.msra.mxu0 0
      %1050 = vmatprep.subr.bf16.mxu0 0
      %1051 = vmatpush1.bf16.xpose.msra.mxu0 0
      %1052 = vmatprep.subr.bf16.mxu0 0
      %1053 = vmatpush1.bf16.xpose.msra.mxu0 0
      %1054 = vmatprep.subr.bf16.mxu0 0
      %1055 = vmatpush1.bf16.xpose.msra.mxu0 0
      %1056 = vmatprep.subr.bf16.mxu0 0
      %1057 = vmatpush1.bf16.xpose.msra.mxu0 0
      %1058 = vmatprep.subr.bf16.mxu0 0
      %1059 = vmatpush1.bf16.xpose.msra.mxu0 0
      %1060 = vmatprep.subr.bf16.mxu0 0
      %1061 = vmatpush1.bf16.xpose.msra.mxu0 0
      %1062 = vmatprep.subr.bf16.mxu0 0
      %1063 = vmatpush1.bf16.xpose.msra.mxu0 0
      %1064 = vmatprep.subr.bf16.mxu0 0
      %1065 = vmatpush1.bf16.xpose.msra.mxu0 0
      %1066 = vmatprep.subr.bf16.mxu0 0
      %1067 = vmatpush1.bf16.xpose.msra.mxu0 0
      %1068 = vmatprep.mubr.bf16.mxu0 0
      %1069 = vmatmul.mubr.bf16.gmra.mrb[0].mxu0 %v1031
      %v1070 = vpop.f32.mrb[0].mxu0
      %v1071 = vadd.f32 %v802, %v1070
      %v1072 = vpop.f32.mrb[0].mxu0
      %v1073 = vpop.f32.mrb[0].mxu0
      %v1074 = vpop.f32.mrb[0].mxu0
      %1075 = vdwg.mxu0
      %1076 = vrot.lane.b32.xlu0 %v807, 120
      %v1077 = vpop.permute.xlu0 %1076
      %1078 = vrot.lane.b32.xlu0 %v807, 88
      %v1079 = vpop.permute.xlu0 %1078
      %v1081 = vsel %vm810, %v1077, 0
      %v1084 = vsel %vm810, %v1079, 0
      %1086 = vmatprep.subr.bf16.mxu0 0
      %1087 = vmatpush1.bf16.xpose.msra.mxu0 %v1084
      %1088 = vmatprep.subr.bf16.mxu0 0
      %1089 = vmatpush1.bf16.xpose.msra.mxu0 0
      %1090 = vmatprep.subr.bf16.mxu0 0
      %1091 = vmatpush1.bf16.xpose.msra.mxu0 0
      %1092 = vmatprep.subr.bf16.mxu0 0
      %1093 = vmatpush1.bf16.xpose.msra.mxu0 0
      %1094 = vmatprep.subr.bf16.mxu0 0
      %1095 = vmatpush1.bf16.xpose.msra.mxu0 0
      %1096 = vmatprep.subr.bf16.mxu0 0
      %1097 = vmatpush1.bf16.xpose.msra.mxu0 0
      %1098 = vmatprep.subr.bf16.mxu0 0
      %1099 = vmatpush1.bf16.xpose.msra.mxu0 0
      %1100 = vmatprep.subr.bf16.mxu0 0
      %1101 = vmatpush1.bf16.xpose.msra.mxu0 0
      %1102 = vmatprep.subr.bf16.mxu0 0
      %1103 = vmatpush1.bf16.xpose.msra.mxu0 0
      %1104 = vmatprep.subr.bf16.mxu0 0
      %1105 = vmatpush1.bf16.xpose.msra.mxu0 0
      %1106 = vmatprep.subr.bf16.mxu0 0
      %1107 = vmatpush1.bf16.xpose.msra.mxu0 0
      %1108 = vmatprep.subr.bf16.mxu0 0
      %1109 = vmatpush1.bf16.xpose.msra.mxu0 0
      %1110 = vmatprep.subr.bf16.mxu0 0
      %1111 = vmatpush1.bf16.xpose.msra.mxu0 0
      %1112 = vmatprep.subr.bf16.mxu0 0
      %1113 = vmatpush1.bf16.xpose.msra.mxu0 0
      %1114 = vmatprep.subr.bf16.mxu0 0
      %1115 = vmatpush1.bf16.xpose.msra.mxu0 0
      %1116 = vmatprep.subr.bf16.mxu0 0
      %1117 = vmatpush1.bf16.xpose.msra.mxu0 0
      %1118 = vmatprep.mubr.bf16.mxu0 0
      %1119 = vmatmul.mubr.bf16.gmra.mrb[0].mxu0 %v1081
      %v1120 = vpop.f32.mrb[0].mxu0
      %v1121 = vadd.f32 %v802, %v1120
      %v1122 = vpop.f32.mrb[0].mxu0
      %v1123 = vpop.f32.mrb[0].mxu0
      %v1124 = vpop.f32.mrb[0].mxu0
      %1125 = vdwg.mxu0
      %v1126 = vsel %vm810, %v1071, -inf
      %1127 = vmax.xlane.f32.xlu0 %v1126
      %v1128 = vpop.xlane.xlu0 %1127
      %v1129 = vsel %vm810, %v1121, -inf
      %1130 = vmax.xlane.f32.xlu0 %v1129
      %v1131 = vpop.xlane.xlu0 %1130
      %v1132 = vsub.f32 %v1071, %v1128
      %v1133 = vsub.f32 %v1121, %v1131
      %v1134 = vmul.f32 %v1132, 1.442695
      %v1135 = vpow.pop %v1134
      %v1136 = vmul.f32 %v1133, 1.442695
      %v1137 = vpow.pop %v1136
      %v1138 = vsel %vm810, %v1135, 0.0
      %1139 = vadd.xlane.f32.xlu0 %v1138
      %v1140 = vpop.xlane.xlu0 %1139
      %v1141 = vsel %vm810, %v1137, 0.0
      %1142 = vadd.xlane.f32.xlu0 %v1141
      %v1143 = vpop.xlane.xlu0 %1142
      %v1144 = vrcp.pop %v1140
      %v1145 = vrcp.pop %v1143
      %v1146 = vmul.f32 %v1135, %v1144
      %v1147 = vmul.f32 %v1137, %v1145
      %v1148 = vpack.c.bf16 %v1146, %v1146
      %v1149 = vpack.c.bf16 %v1147, %v1147
      %1150 = vrot.lane.b32.xlu0 %v806, 56
      %v1151 = vpop.permute.xlu0 %1150
      %v1153 = vsel %vm810, %v1148, 0
      %v1156 = vsel %vm934, %v1151, 0
      %1158 = vmatprep.subr.bf16.mxu0 0
      %1159 = vmatpush1.bf16.msra.mxu0 %v1156
      %1160 = vmatprep.subr.bf16.mxu0 0
      %1161 = vmatpush1.bf16.msra.mxu0 0
      %1162 = vmatprep.subr.bf16.mxu0 0
      %1163 = vmatpush1.bf16.msra.mxu0 0
      %1164 = vmatprep.subr.bf16.mxu0 0
      %1165 = vmatpush1.bf16.msra.mxu0 0
      %1166 = vmatprep.subr.bf16.mxu0 0
      %1167 = vmatpush1.bf16.msra.mxu0 0
      %1168 = vmatprep.subr.bf16.mxu0 0
      %1169 = vmatpush1.bf16.msra.mxu0 0
      %1170 = vmatprep.subr.bf16.mxu0 0
      %1171 = vmatpush1.bf16.msra.mxu0 0
      %1172 = vmatprep.subr.bf16.mxu0 0
      %1173 = vmatpush1.bf16.msra.mxu0 0
      %1174 = vmatprep.subr.bf16.mxu0 0
      %1175 = vmatpush1.bf16.msra.mxu0 0
      %1176 = vmatprep.subr.bf16.mxu0 0
      %1177 = vmatpush1.bf16.msra.mxu0 0
      %1178 = vmatprep.subr.bf16.mxu0 0
      %1179 = vmatpush1.bf16.msra.mxu0 0
      %1180 = vmatprep.subr.bf16.mxu0 0
      %1181 = vmatpush1.bf16.msra.mxu0 0
      %1182 = vmatprep.subr.bf16.mxu0 0
      %1183 = vmatpush1.bf16.msra.mxu0 0
      %1184 = vmatprep.subr.bf16.mxu0 0
      %1185 = vmatpush1.bf16.msra.mxu0 0
      %1186 = vmatprep.subr.bf16.mxu0 0
      %1187 = vmatpush1.bf16.msra.mxu0 0
      %1188 = vmatprep.subr.bf16.mxu0 0
      %1189 = vmatpush1.bf16.msra.mxu0 0
      %1190 = vmatprep.mubr.bf16.mxu0 0
      %1191 = vmatmul.mubr.bf16.gmra.mrb[0].mxu0 %v1153
      %v1192 = vpop.f32.mrb[0].mxu0
      %v1193 = vadd.f32 0.0, %v1192
      %v1194 = vpop.f32.mrb[0].mxu0
      %v1195 = vpop.f32.mrb[0].mxu0
      %v1196 = vpop.f32.mrb[0].mxu0
      %1197 = vdwg.mxu0
      %1198 = vrot.lane.b32.xlu0 %v807, 56
      %v1199 = vpop.permute.xlu0 %1198
      %v1201 = vsel %vm810, %v1149, 0
      %v1204 = vsel %vm934, %v1199, 0
      %1206 = vmatprep.subr.bf16.mxu0 0
      %1207 = vmatpush1.bf16.msra.mxu0 %v1204
      %1208 = vmatprep.subr.bf16.mxu0 0
      %1209 = vmatpush1.bf16.msra.mxu0 0
      %1210 = vmatprep.subr.bf16.mxu0 0
      %1211 = vmatpush1.bf16.msra.mxu0 0
      %1212 = vmatprep.subr.bf16.mxu0 0
      %1213 = vmatpush1.bf16.msra.mxu0 0
      %1214 = vmatprep.subr.bf16.mxu0 0
      %1215 = vmatpush1.bf16.msra.mxu0 0
      %1216 = vmatprep.subr.bf16.mxu0 0
      %1217 = vmatpush1.bf16.msra.mxu0 0
      %1218 = vmatprep.subr.bf16.mxu0 0
      %1219 = vmatpush1.bf16.msra.mxu0 0
      %1220 = vmatprep.subr.bf16.mxu0 0
      %1221 = vmatpush1.bf16.msra.mxu0 0
      %1222 = vmatprep.subr.bf16.mxu0 0
      %1223 = vmatpush1.bf16.msra.mxu0 0
      %1224 = vmatprep.subr.bf16.mxu0 0
      %1225 = vmatpush1.bf16.msra.mxu0 0
      %1226 = vmatprep.subr.bf16.mxu0 0
      %1227 = vmatpush1.bf16.msra.mxu0 0
      %1228 = vmatprep.subr.bf16.mxu0 0
      %1229 = vmatpush1.bf16.msra.mxu0 0
      %1230 = vmatprep.subr.bf16.mxu0 0
      %1231 = vmatpush1.bf16.msra.mxu0 0
      %1232 = vmatprep.subr.bf16.mxu0 0
      %1233 = vmatpush1.bf16.msra.mxu0 0
      %1234 = vmatprep.subr.bf16.mxu0 0
      %1235 = vmatpush1.bf16.msra.mxu0 0
      %1236 = vmatprep.subr.bf16.mxu0 0
      %1237 = vmatpush1.bf16.msra.mxu0 0
      %1238 = vmatprep.mubr.bf16.mxu0 0
      %1239 = vmatmul.mubr.bf16.gmra.mrb[0].mxu0 %v1201
      %v1240 = vpop.f32.mrb[0].mxu0
      %v1241 = vadd.f32 0.0, %v1240
      %v1242 = vpop.f32.mrb[0].mxu0
      %v1243 = vpop.f32.mrb[0].mxu0
      %v1244 = vpop.f32.mrb[0].mxu0
      %1245 = vdwg.mxu0
      %1246 = vrot.lane.b32.xlu0 %v806, 112
      %v1247 = vpop.permute.xlu0 %1246
      %1248 = vrot.lane.b32.xlu0 %v806, 80
      %v1249 = vpop.permute.xlu0 %1248
      %v1251 = vsel %vm810, %v1247, 0
      %v1254 = vsel %vm810, %v1249, 0
      %1256 = vmatprep.subr.bf16.mxu0 0
      %1257 = vmatpush1.bf16.xpose.msra.mxu0 %v1254
      %1258 = vmatprep.subr.bf16.mxu0 0
      %1259 = vmatpush1.bf16.xpose.msra.mxu0 0
      %1260 = vmatprep.subr.bf16.mxu0 0
      %1261 = vmatpush1.bf16.xpose.msra.mxu0 0
      %1262 = vmatprep.subr.bf16.mxu0 0
      %1263 = vmatpush1.bf16.xpose.msra.mxu0 0
      %1264 = vmatprep.subr.bf16.mxu0 0
      %1265 = vmatpush1.bf16.xpose.msra.mxu0 0
      %1266 = vmatprep.subr.bf16.mxu0 0
      %1267 = vmatpush1.bf16.xpose.msra.mxu0 0
      %1268 = vmatprep.subr.bf16.mxu0 0
      %1269 = vmatpush1.bf16.xpose.msra.mxu0 0
      %1270 = vmatprep.subr.bf16.mxu0 0
      %1271 = vmatpush1.bf16.xpose.msra.mxu0 0
      %1272 = vmatprep.subr.bf16.mxu0 0
      %1273 = vmatpush1.bf16.xpose.msra.mxu0 0
      %1274 = vmatprep.subr.bf16.mxu0 0
      %1275 = vmatpush1.bf16.xpose.msra.mxu0 0
      %1276 = vmatprep.subr.bf16.mxu0 0
      %1277 = vmatpush1.bf16.xpose.msra.mxu0 0
      %1278 = vmatprep.subr.bf16.mxu0 0
      %1279 = vmatpush1.bf16.xpose.msra.mxu0 0
      %1280 = vmatprep.subr.bf16.mxu0 0
      %1281 = vmatpush1.bf16.xpose.msra.mxu0 0
      %1282 = vmatprep.subr.bf16.mxu0 0
      %1283 = vmatpush1.bf16.xpose.msra.mxu0 0
      %1284 = vmatprep.subr.bf16.mxu0 0
      %1285 = vmatpush1.bf16.xpose.msra.mxu0 0
      %1286 = vmatprep.subr.bf16.mxu0 0
      %1287 = vmatpush1.bf16.xpose.msra.mxu0 0
      %1288 = vmatprep.mubr.bf16.mxu0 0
      %1289 = vmatmul.mubr.bf16.gmra.mrb[0].mxu0 %v1251
      %v1290 = vpop.f32.mrb[0].mxu0
      %v1291 = vadd.f32 %v802, %v1290
      %v1292 = vpop.f32.mrb[0].mxu0
      %v1293 = vpop.f32.mrb[0].mxu0
      %v1294 = vpop.f32.mrb[0].mxu0
      %1295 = vdwg.mxu0
      %1296 = vrot.lane.b32.xlu0 %v807, 112
      %v1297 = vpop.permute.xlu0 %1296
      %1298 = vrot.lane.b32.xlu0 %v807, 80
      %v1299 = vpop.permute.xlu0 %1298
      %v1301 = vsel %vm810, %v1297, 0
      %v1304 = vsel %vm810, %v1299, 0
      %1306 = vmatprep.subr.bf16.mxu0 0
      %1307 = vmatpush1.bf16.xpose.msra.mxu0 %v1304
      %1308 = vmatprep.subr.bf16.mxu0 0
      %1309 = vmatpush1.bf16.xpose.msra.mxu0 0
      %1310 = vmatprep.subr.bf16.mxu0 0
      %1311 = vmatpush1.bf16.xpose.msra.mxu0 0
      %1312 = vmatprep.subr.bf16.mxu0 0
      %1313 = vmatpush1.bf16.xpose.msra.mxu0 0
      %1314 = vmatprep.subr.bf16.mxu0 0
      %1315 = vmatpush1.bf16.xpose.msra.mxu0 0
      %1316 = vmatprep.subr.bf16.mxu0 0
      %1317 = vmatpush1.bf16.xpose.msra.mxu0 0
      %1318 = vmatprep.subr.bf16.mxu0 0
      %1319 = vmatpush1.bf16.xpose.msra.mxu0 0
      %1320 = vmatprep.subr.bf16.mxu0 0
      %1321 = vmatpush1.bf16.xpose.msra.mxu0 0
      %1322 = vmatprep.subr.bf16.mxu0 0
      %1323 = vmatpush1.bf16.xpose.msra.mxu0 0
      %1324 = vmatprep.subr.bf16.mxu0 0
      %1325 = vmatpush1.bf16.xpose.msra.mxu0 0
      %1326 = vmatprep.subr.bf16.mxu0 0
      %1327 = vmatpush1.bf16.xpose.msra.mxu0 0
      %1328 = vmatprep.subr.bf16.mxu0 0
      %1329 = vmatpush1.bf16.xpose.msra.mxu0 0
      %1330 = vmatprep.subr.bf16.mxu0 0
      %1331 = vmatpush1.bf16.xpose.msra.mxu0 0
      %1332 = vmatprep.subr.bf16.mxu0 0
      %1333 = vmatpush1.bf16.xpose.msra.mxu0 0
      %1334 = vmatprep.subr.bf16.mxu0 0
      %1335 = vmatpush1.bf16.xpose.msra.mxu0 0
      %1336 = vmatprep.subr.bf16.mxu0 0
      %1337 = vmatpush1.bf16.xpose.msra.mxu0 0
      %1338 = vmatprep.mubr.bf16.mxu0 0
      %1339 = vmatmul.mubr.bf16.gmra.mrb[0].mxu0 %v1301
      %v1340 = vpop.f32.mrb[0].mxu0
      %v1341 = vadd.f32 %v802, %v1340
      %v1342 = vpop.f32.mrb[0].mxu0
      %v1343 = vpop.f32.mrb[0].mxu0
      %v1344 = vpop.f32.mrb[0].mxu0
      %1345 = vdwg.mxu0
      %v1346 = vsel %vm810, %v1291, -inf
      %1347 = vmax.xlane.f32.xlu0 %v1346
      %v1348 = vpop.xlane.xlu0 %1347
      %v1349 = vsel %vm810, %v1341, -inf
      %1350 = vmax.xlane.f32.xlu0 %v1349
      %v1351 = vpop.xlane.xlu0 %1350
      %v1352 = vsub.f32 %v1291, %v1348
      %v1353 = vsub.f32 %v1341, %v1351
      %v1354 = vmul.f32 %v1352, 1.442695
      %v1355 = vpow.pop %v1354
      %v1356 = vmul.f32 %v1353, 1.442695
      %v1357 = vpow.pop %v1356
      %v1358 = vsel %vm810, %v1355, 0.0
      %1359 = vadd.xlane.f32.xlu0 %v1358
      %v1360 = vpop.xlane.xlu0 %1359
      %v1361 = vsel %vm810, %v1357, 0.0
      %1362 = vadd.xlane.f32.xlu0 %v1361
      %v1363 = vpop.xlane.xlu0 %1362
      %v1364 = vrcp.pop %v1360
      %v1365 = vrcp.pop %v1363
      %v1366 = vmul.f32 %v1355, %v1364
      %v1367 = vmul.f32 %v1357, %v1365
      %v1368 = vpack.c.bf16 %v1366, %v1366
      %v1369 = vpack.c.bf16 %v1367, %v1367
      %1370 = vrot.lane.b32.xlu0 %v806, 48
      %v1371 = vpop.permute.xlu0 %1370
      %v1373 = vsel %vm810, %v1368, 0
      %v1376 = vsel %vm934, %v1371, 0
      %1378 = vmatprep.subr.bf16.mxu0 0
      %1379 = vmatpush1.bf16.msra.mxu0 %v1376
      %1380 = vmatprep.subr.bf16.mxu0 0
      %1381 = vmatpush1.bf16.msra.mxu0 0
      %1382 = vmatprep.subr.bf16.mxu0 0
      %1383 = vmatpush1.bf16.msra.mxu0 0
      %1384 = vmatprep.subr.bf16.mxu0 0
      %1385 = vmatpush1.bf16.msra.mxu0 0
      %1386 = vmatprep.subr.bf16.mxu0 0
      %1387 = vmatpush1.bf16.msra.mxu0 0
      %1388 = vmatprep.subr.bf16.mxu0 0
      %1389 = vmatpush1.bf16.msra.mxu0 0
      %1390 = vmatprep.subr.bf16.mxu0 0
      %1391 = vmatpush1.bf16.msra.mxu0 0
      %1392 = vmatprep.subr.bf16.mxu0 0
      %1393 = vmatpush1.bf16.msra.mxu0 0
      %1394 = vmatprep.subr.bf16.mxu0 0
      %1395 = vmatpush1.bf16.msra.mxu0 0
      %1396 = vmatprep.subr.bf16.mxu0 0
      %1397 = vmatpush1.bf16.msra.mxu0 0
      %1398 = vmatprep.subr.bf16.mxu0 0
      %1399 = vmatpush1.bf16.msra.mxu0 0
      %1400 = vmatprep.subr.bf16.mxu0 0
      %1401 = vmatpush1.bf16.msra.mxu0 0
      %1402 = vmatprep.subr.bf16.mxu0 0
      %1403 = vmatpush1.bf16.msra.mxu0 0
      %1404 = vmatprep.subr.bf16.mxu0 0
      %1405 = vmatpush1.bf16.msra.mxu0 0
      %1406 = vmatprep.subr.bf16.mxu0 0
      %1407 = vmatpush1.bf16.msra.mxu0 0
      %1408 = vmatprep.subr.bf16.mxu0 0
      %1409 = vmatpush1.bf16.msra.mxu0 0
      %1410 = vmatprep.mubr.bf16.mxu0 0
      %1411 = vmatmul.mubr.bf16.gmra.mrb[0].mxu0 %v1373
      %v1412 = vpop.f32.mrb[0].mxu0
      %v1413 = vadd.f32 0.0, %v1412
      %v1414 = vpop.f32.mrb[0].mxu0
      %v1415 = vpop.f32.mrb[0].mxu0
      %v1416 = vpop.f32.mrb[0].mxu0
      %1417 = vdwg.mxu0
      %1418 = vrot.lane.b32.xlu0 %v807, 48
      %v1419 = vpop.permute.xlu0 %1418
      %v1421 = vsel %vm810, %v1369, 0
      %v1424 = vsel %vm934, %v1419, 0
      %1426 = vmatprep.subr.bf16.mxu0 0
      %1427 = vmatpush1.bf16.msra.mxu0 %v1424
      %1428 = vmatprep.subr.bf16.mxu0 0
      %1429 = vmatpush1.bf16.msra.mxu0 0
      %1430 = vmatprep.subr.bf16.mxu0 0
      %1431 = vmatpush1.bf16.msra.mxu0 0
      %1432 = vmatprep.subr.bf16.mxu0 0
      %1433 = vmatpush1.bf16.msra.mxu0 0
      %1434 = vmatprep.subr.bf16.mxu0 0
      %1435 = vmatpush1.bf16.msra.mxu0 0
      %1436 = vmatprep.subr.bf16.mxu0 0
      %1437 = vmatpush1.bf16.msra.mxu0 0
      %1438 = vmatprep.subr.bf16.mxu0 0
      %1439 = vmatpush1.bf16.msra.mxu0 0
      %1440 = vmatprep.subr.bf16.mxu0 0
      %1441 = vmatpush1.bf16.msra.mxu0 0
      %1442 = vmatprep.subr.bf16.mxu0 0
      %1443 = vmatpush1.bf16.msra.mxu0 0
      %1444 = vmatprep.subr.bf16.mxu0 0
      %1445 = vmatpush1.bf16.msra.mxu0 0
      %1446 = vmatprep.subr.bf16.mxu0 0
      %1447 = vmatpush1.bf16.msra.mxu0 0
      %1448 = vmatprep.subr.bf16.mxu0 0
      %1449 = vmatpush1.bf16.msra.mxu0 0
      %1450 = vmatprep.subr.bf16.mxu0 0
      %1451 = vmatpush1.bf16.msra.mxu0 0
      %1452 = vmatprep.subr.bf16.mxu0 0
      %1453 = vmatpush1.bf16.msra.mxu0 0
      %1454 = vmatprep.subr.bf16.mxu0 0
      %1455 = vmatpush1.bf16.msra.mxu0 0
      %1456 = vmatprep.subr.bf16.mxu0 0
      %1457 = vmatpush1.bf16.msra.mxu0 0
      %1458 = vmatprep.mubr.bf16.mxu0 0
      %1459 = vmatmul.mubr.bf16.gmra.mrb[0].mxu0 %v1421
      %v1460 = vpop.f32.mrb[0].mxu0
      %v1461 = vadd.f32 0.0, %v1460
      %v1462 = vpop.f32.mrb[0].mxu0
      %v1463 = vpop.f32.mrb[0].mxu0
      %v1464 = vpop.f32.mrb[0].mxu0
      %1465 = vdwg.mxu0
      %1466 = vrot.lane.b32.xlu0 %v806, 104
      %v1467 = vpop.permute.xlu0 %1466
      %1468 = vrot.lane.b32.xlu0 %v806, 72
      %v1469 = vpop.permute.xlu0 %1468
      %v1471 = vsel %vm810, %v1467, 0
      %v1474 = vsel %vm810, %v1469, 0
      %1476 = vmatprep.subr.bf16.mxu0 0
      %1477 = vmatpush1.bf16.xpose.msra.mxu0 %v1474
      %1478 = vmatprep.subr.bf16.mxu0 0
      %1479 = vmatpush1.bf16.xpose.msra.mxu0 0
      %1480 = vmatprep.subr.bf16.mxu0 0
      %1481 = vmatpush1.bf16.xpose.msra.mxu0 0
      %1482 = vmatprep.subr.bf16.mxu0 0
      %1483 = vmatpush1.bf16.xpose.msra.mxu0 0
      %1484 = vmatprep.subr.bf16.mxu0 0
      %1485 = vmatpush1.bf16.xpose.msra.mxu0 0
      %1486 = vmatprep.subr.bf16.mxu0 0
      %1487 = vmatpush1.bf16.xpose.msra.mxu0 0
      %1488 = vmatprep.subr.bf16.mxu0 0
      %1489 = vmatpush1.bf16.xpose.msra.mxu0 0
      %1490 = vmatprep.subr.bf16.mxu0 0
      %1491 = vmatpush1.bf16.xpose.msra.mxu0 0
      %1492 = vmatprep.subr.bf16.mxu0 0
      %1493 = vmatpush1.bf16.xpose.msra.mxu0 0
      %1494 = vmatprep.subr.bf16.mxu0 0
      %1495 = vmatpush1.bf16.xpose.msra.mxu0 0
      %1496 = vmatprep.subr.bf16.mxu0 0
      %1497 = vmatpush1.bf16.xpose.msra.mxu0 0
      %1498 = vmatprep.subr.bf16.mxu0 0
      %1499 = vmatpush1.bf16.xpose.msra.mxu0 0
      %1500 = vmatprep.subr.bf16.mxu0 0
      %1501 = vmatpush1.bf16.xpose.msra.mxu0 0
      %1502 = vmatprep.subr.bf16.mxu0 0
      %1503 = vmatpush1.bf16.xpose.msra.mxu0 0
      %1504 = vmatprep.subr.bf16.mxu0 0
      %1505 = vmatpush1.bf16.xpose.msra.mxu0 0
      %1506 = vmatprep.subr.bf16.mxu0 0
      %1507 = vmatpush1.bf16.xpose.msra.mxu0 0
      %1508 = vmatprep.mubr.bf16.mxu0 0
      %1509 = vmatmul.mubr.bf16.gmra.mrb[0].mxu0 %v1471
      %v1510 = vpop.f32.mrb[0].mxu0
      %v1511 = vadd.f32 %v802, %v1510
      %v1512 = vpop.f32.mrb[0].mxu0
      %v1513 = vpop.f32.mrb[0].mxu0
      %v1514 = vpop.f32.mrb[0].mxu0
      %1515 = vdwg.mxu0
      %1516 = vrot.lane.b32.xlu0 %v807, 104
      %v1517 = vpop.permute.xlu0 %1516
      %1518 = vrot.lane.b32.xlu0 %v807, 72
      %v1519 = vpop.permute.xlu0 %1518
      %v1521 = vsel %vm810, %v1517, 0
      %v1524 = vsel %vm810, %v1519, 0
      %1526 = vmatprep.subr.bf16.mxu0 0
      %1527 = vmatpush1.bf16.xpose.msra.mxu0 %v1524
      %1528 = vmatprep.subr.bf16.mxu0 0
      %1529 = vmatpush1.bf16.xpose.msra.mxu0 0
      %1530 = vmatprep.subr.bf16.mxu0 0
      %1531 = vmatpush1.bf16.xpose.msra.mxu0 0
      %1532 = vmatprep.subr.bf16.mxu0 0
      %1533 = vmatpush1.bf16.xpose.msra.mxu0 0
      %1534 = vmatprep.subr.bf16.mxu0 0
      %1535 = vmatpush1.bf16.xpose.msra.mxu0 0
      %1536 = vmatprep.subr.bf16.mxu0 0
      %1537 = vmatpush1.bf16.xpose.msra.mxu0 0
      %1538 = vmatprep.subr.bf16.mxu0 0
      %1539 = vmatpush1.bf16.xpose.msra.mxu0 0
      %1540 = vmatprep.subr.bf16.mxu0 0
      %1541 = vmatpush1.bf16.xpose.msra.mxu0 0
      %1542 = vmatprep.subr.bf16.mxu0 0
      %1543 = vmatpush1.bf16.xpose.msra.mxu0 0
      %1544 = vmatprep.subr.bf16.mxu0 0
      %1545 = vmatpush1.bf16.xpose.msra.mxu0 0
      %1546 = vmatprep.subr.bf16.mxu0 0
      %1547 = vmatpush1.bf16.xpose.msra.mxu0 0
      %1548 = vmatprep.subr.bf16.mxu0 0
      %1549 = vmatpush1.bf16.xpose.msra.mxu0 0
      %1550 = vmatprep.subr.bf16.mxu0 0
      %1551 = vmatpush1.bf16.xpose.msra.mxu0 0
      %1552 = vmatprep.subr.bf16.mxu0 0
      %1553 = vmatpush1.bf16.xpose.msra.mxu0 0
      %1554 = vmatprep.subr.bf16.mxu0 0
      %1555 = vmatpush1.bf16.xpose.msra.mxu0 0
      %1556 = vmatprep.subr.bf16.mxu0 0
      %1557 = vmatpush1.bf16.xpose.msra.mxu0 0
      %1558 = vmatprep.mubr.bf16.mxu0 0
      %1559 = vmatmul.mubr.bf16.gmra.mrb[0].mxu0 %v1521
      %v1560 = vpop.f32.mrb[0].mxu0
      %v1561 = vadd.f32 %v802, %v1560
      %v1562 = vpop.f32.mrb[0].mxu0
      %v1563 = vpop.f32.mrb[0].mxu0
      %v1564 = vpop.f32.mrb[0].mxu0
      %1565 = vdwg.mxu0
      %v1566 = vsel %vm810, %v1511, -inf
      %1567 = vmax.xlane.f32.xlu0 %v1566
      %v1568 = vpop.xlane.xlu0 %1567
      %v1569 = vsel %vm810, %v1561, -inf
      %1570 = vmax.xlane.f32.xlu0 %v1569
      %v1571 = vpop.xlane.xlu0 %1570
      %v1572 = vsub.f32 %v1511, %v1568
      %v1573 = vsub.f32 %v1561, %v1571
      %v1574 = vmul.f32 %v1572, 1.442695
      %v1575 = vpow.pop %v1574
      %v1576 = vmul.f32 %v1573, 1.442695
      %v1577 = vpow.pop %v1576
      %v1578 = vsel %vm810, %v1575, 0.0
      %1579 = vadd.xlane.f32.xlu0 %v1578
      %v1580 = vpop.xlane.xlu0 %1579
      %v1581 = vsel %vm810, %v1577, 0.0
      %1582 = vadd.xlane.f32.xlu0 %v1581
      %v1583 = vpop.xlane.xlu0 %1582
      %v1584 = vrcp.pop %v1580
      %v1585 = vrcp.pop %v1583
      %v1586 = vmul.f32 %v1575, %v1584
      %v1587 = vmul.f32 %v1577, %v1585
      %v1588 = vpack.c.bf16 %v1586, %v1586
      %v1589 = vpack.c.bf16 %v1587, %v1587
      %1590 = vrot.lane.b32.xlu0 %v806, 40
      %v1591 = vpop.permute.xlu0 %1590
      %v1593 = vsel %vm810, %v1588, 0
      %v1596 = vsel %vm934, %v1591, 0
      %1598 = vmatprep.subr.bf16.mxu0 0
      %1599 = vmatpush1.bf16.msra.mxu0 %v1596
      %1600 = vmatprep.subr.bf16.mxu0 0
      %1601 = vmatpush1.bf16.msra.mxu0 0
      %1602 = vmatprep.subr.bf16.mxu0 0
      %1603 = vmatpush1.bf16.msra.mxu0 0
      %1604 = vmatprep.subr.bf16.mxu0 0
      %1605 = vmatpush1.bf16.msra.mxu0 0
      %1606 = vmatprep.subr.bf16.mxu0 0
      %1607 = vmatpush1.bf16.msra.mxu0 0
      %1608 = vmatprep.subr.bf16.mxu0 0
      %1609 = vmatpush1.bf16.msra.mxu0 0
      %1610 = vmatprep.subr.bf16.mxu0 0
      %1611 = vmatpush1.bf16.msra.mxu0 0
      %1612 = vmatprep.subr.bf16.mxu0 0
      %1613 = vmatpush1.bf16.msra.mxu0 0
      %1614 = vmatprep.subr.bf16.mxu0 0
      %1615 = vmatpush1.bf16.msra.mxu0 0
      %1616 = vmatprep.subr.bf16.mxu0 0
      %1617 = vmatpush1.bf16.msra.mxu0 0
      %1618 = vmatprep.subr.bf16.mxu0 0
      %1619 = vmatpush1.bf16.msra.mxu0 0
      %1620 = vmatprep.subr.bf16.mxu0 0
      %1621 = vmatpush1.bf16.msra.mxu0 0
      %1622 = vmatprep.subr.bf16.mxu0 0
      %1623 = vmatpush1.bf16.msra.mxu0 0
      %1624 = vmatprep.subr.bf16.mxu0 0
      %1625 = vmatpush1.bf16.msra.mxu0 0
      %1626 = vmatprep.subr.bf16.mxu0 0
      %1627 = vmatpush1.bf16.msra.mxu0 0
      %1628 = vmatprep.subr.bf16.mxu0 0
      %1629 = vmatpush1.bf16.msra.mxu0 0
      %1630 = vmatprep.mubr.bf16.mxu0 0
      %1631 = vmatmul.mubr.bf16.gmra.mrb[0].mxu0 %v1593
      %v1632 = vpop.f32.mrb[0].mxu0
      %v1633 = vadd.f32 0.0, %v1632
      %v1634 = vpop.f32.mrb[0].mxu0
      %v1635 = vpop.f32.mrb[0].mxu0
      %v1636 = vpop.f32.mrb[0].mxu0
      %1637 = vdwg.mxu0
      %1638 = vrot.lane.b32.xlu0 %v807, 40
      %v1639 = vpop.permute.xlu0 %1638
      %v1641 = vsel %vm810, %v1589, 0
      %v1644 = vsel %vm934, %v1639, 0
      %1646 = vmatprep.subr.bf16.mxu0 0
      %1647 = vmatpush1.bf16.msra.mxu0 %v1644
      %1648 = vmatprep.subr.bf16.mxu0 0
      %1649 = vmatpush1.bf16.msra.mxu0 0
      %1650 = vmatprep.subr.bf16.mxu0 0
      %1651 = vmatpush1.bf16.msra.mxu0 0
      %1652 = vmatprep.subr.bf16.mxu0 0
      %1653 = vmatpush1.bf16.msra.mxu0 0
      %1654 = vmatprep.subr.bf16.mxu0 0
      %1655 = vmatpush1.bf16.msra.mxu0 0
      %1656 = vmatprep.subr.bf16.mxu0 0
      %1657 = vmatpush1.bf16.msra.mxu0 0
      %1658 = vmatprep.subr.bf16.mxu0 0
      %1659 = vmatpush1.bf16.msra.mxu0 0
      %1660 = vmatprep.subr.bf16.mxu0 0
      %1661 = vmatpush1.bf16.msra.mxu0 0
      %1662 = vmatprep.subr.bf16.mxu0 0
      %1663 = vmatpush1.bf16.msra.mxu0 0
      %1664 = vmatprep.subr.bf16.mxu0 0
      %1665 = vmatpush1.bf16.msra.mxu0 0
      %1666 = vmatprep.subr.bf16.mxu0 0
      %1667 = vmatpush1.bf16.msra.mxu0 0
      %1668 = vmatprep.subr.bf16.mxu0 0
      %1669 = vmatpush1.bf16.msra.mxu0 0
      %1670 = vmatprep.subr.bf16.mxu0 0
      %1671 = vmatpush1.bf16.msra.mxu0 0
      %1672 = vmatprep.subr.bf16.mxu0 0
      %1673 = vmatpush1.bf16.msra.mxu0 0
      %1674 = vmatprep.subr.bf16.mxu0 0
      %1675 = vmatpush1.bf16.msra.mxu0 0
      %1676 = vmatprep.subr.bf16.mxu0 0
      %1677 = vmatpush1.bf16.msra.mxu0 0
      %1678 = vmatprep.mubr.bf16.mxu0 0
      %1679 = vmatmul.mubr.bf16.gmra.mrb[0].mxu0 %v1641
      %v1680 = vpop.f32.mrb[0].mxu0
      %v1681 = vadd.f32 0.0, %v1680
      %v1682 = vpop.f32.mrb[0].mxu0
      %v1683 = vpop.f32.mrb[0].mxu0
      %v1684 = vpop.f32.mrb[0].mxu0
      %1685 = vdwg.mxu0
      %1688 = vrot.lane.b32.xlu0 %v1193, 8
      %v1689 = vpop.permute.xlu0 %1688
      %1690 = vrot.lane.b32.xlu0 %v1241, 8
      %v1691 = vpop.permute.xlu0 %1690
      %1696 = vrot.lane.b32.xlu0 %v1413, 16
      %v1697 = vpop.permute.xlu0 %1696
      %1698 = vrot.lane.b32.xlu0 %v1461, 16
      %v1699 = vpop.permute.xlu0 %1698
      %1704 = vrot.lane.b32.xlu0 %v1633, 24
      %v1705 = vpop.permute.xlu0 %1704
      %1706 = vrot.lane.b32.xlu0 %v1681, 24
      %v1707 = vpop.permute.xlu0 %1706
      %v1710 = vsel %vm810, %v973, %v1689
      %v1711 = vsel %vm810, %v1021, %v1691
      %vm1712 = vcmask 130048
      %v1713 = vsel %vm1712, %v1710, %v1697
      %v1714 = vsel %vm1712, %v1711, %v1699
      %vm1715 = vcmask 195584
      %v1716 = vsel %vm1715, %v1713, %v1705
      %v1717 = vsel %vm1715, %v1714, %v1707
      %v1718 = vpack.c.bf16 %v1717, %v1716
      %v1719 = vld [vmem:[%s643] sm:$0xf]
      %v1720 = vld [vmem:[%s643 + $0x4] sm:$0xf]
      %v1721 = vld [vmem:[%s643 + $0x8] sm:$0xf]
      %v1722 = vld [vmem:[%s643 + $0xc] sm:$0xf]
      %v1723 = vld [vmem:[%s646] sm:$0x1]
      %v1725 = vlaneseq
      %v1726 = vshrl.u32 %v1725, 7
      %v1727 = vsub.s32 0, %v1726
      %v1728 = vrot.slane %v1723, %v1727
      %v1734 = vunpack.c.l.b16 %v1719
      %v1735 = vunpack.c.l.b16 %v1720
      %v1736 = vunpack.c.l.b16 %v1721
      %v1737 = vunpack.c.l.b16 %v1722
      %v1738 = vpack.c.b16 %v1735, %v1734
      %v1739 = vpack.c.b16 %v1737, %v1736
      %v1743 = vsel %vm689, %v1718, 0
      %1745 = vmatprep.subr.bf16.mxu0 0
      %1746 = vmatpush1.bf16.msra.mxu0 %v1738
      %1747 = vmatprep.subr.bf16.mxu0 0
      %1748 = vmatpush1.bf16.msra.mxu0 %v1739
      %1749 = vmatprep.subr.bf16.mxu0 0
      %1750 = vmatpush1.bf16.msra.mxu0 0
      %1751 = vmatprep.subr.bf16.mxu0 0
      %1752 = vmatpush1.bf16.msra.mxu0 0
      %1753 = vmatprep.subr.bf16.mxu0 0
      %1754 = vmatpush1.bf16.msra.mxu0 0
      %1755 = vmatprep.subr.bf16.mxu0 0
      %1756 = vmatpush1.bf16.msra.mxu0 0
      %1757 = vmatprep.subr.bf16.mxu0 0
      %1758 = vmatpush1.bf16.msra.mxu0 0
      %1759 = vmatprep.subr.bf16.mxu0 0
      %1760 = vmatpush1.bf16.msra.mxu0 0
      %1761 = vmatprep.subr.bf16.mxu0 0
      %1762 = vmatpush1.bf16.msra.mxu0 0
      %1763 = vmatprep.subr.bf16.mxu0 0
      %1764 = vmatpush1.bf16.msra.mxu0 0
      %1765 = vmatprep.subr.bf16.mxu0 0
      %1766 = vmatpush1.bf16.msra.mxu0 0
      %1767 = vmatprep.subr.bf16.mxu0 0
      %1768 = vmatpush1.bf16.msra.mxu0 0
      %1769 = vmatprep.subr.bf16.mxu0 0
      %1770 = vmatpush1.bf16.msra.mxu0 0
      %1771 = vmatprep.subr.bf16.mxu0 0
      %1772 = vmatpush1.bf16.msra.mxu0 0
      %1773 = vmatprep.subr.bf16.mxu0 0
      %1774 = vmatpush1.bf16.msra.mxu0 0
      %1775 = vmatprep.subr.bf16.mxu0 0
      %1776 = vmatpush1.bf16.msra.mxu0 0
      %1777 = vmatprep.mubr.bf16.mxu0 0
      %1778 = vmatmul.mubr.bf16.gmra.mrb[0].mxu0 %v1743
      %v1779 = vpop.f32.mrb[0].mxu0
      %v1780 = vadd.f32 %v1728, %v1779
      %v1781 = vpop.f32.mrb[0].mxu0
      %v1782 = vpop.f32.mrb[0].mxu0
      %v1783 = vadd.f32 %v1728, %v1782
      %v1784 = vpop.f32.mrb[0].mxu0
      %1785 = vdwg.mxu0
      %v1786 = vadd.f32 %v685, %v1780
      %v1787 = vadd.f32 %v686, %v1783
      %v1788 = vld [vmem:[%s649] sm:$0x1]
      %v1789 = vld [vmem:[%s652] sm:$0x1]
      %v1790 = vsel %vm689, %v1786, 0.0
      %1791 = vadd.xlane.f32.xlu0 %v1790
      %v1792 = vpop.xlane.xlu0 %1791
      %v1793 = vsel %vm689, %v1787, 0.0
      %1794 = vadd.xlane.f32.xlu0 %v1793
      %v1795 = vpop.xlane.xlu0 %1794
      %v1796 = vmul.f32 %v1792, %v696
      %v1797 = vmul.f32 %v1795, %v696
      %v1798 = vsub.f32 %v1786, %v1796
      %v1799 = vsub.f32 %v1787, %v1797
      %v1800 = vmul.f32 %v1798, %v1798
      %v1801 = vmul.f32 %v1799, %v1799
      %v1802 = vsel %vm689, %v1800, 0.0
      %1803 = vadd.xlane.f32.xlu0 %v1802
      %v1804 = vpop.xlane.xlu0 %1803
      %v1805 = vsel %vm689, %v1801, 0.0
      %1806 = vadd.xlane.f32.xlu0 %v1805
      %v1807 = vpop.xlane.xlu0 %1806
      %v1808 = vmul.f32 %v1804, %v696
      %v1809 = vmul.f32 %v1807, %v696
      %v1810 = vadd.f32 %v1808, 1e-05
      %v1811 = vadd.f32 %v1809, 1e-05
      %v1812 = vrsqrt.pop %v1810
      %v1813 = vrsqrt.pop %v1811
      %v1814 = vmul.f32 %v1798, %v1812
      %v1815 = vmul.f32 %v1799, %v1813
      %v1817 = vlaneseq
      %v1818 = vshrl.u32 %v1817, 7
      %v1819 = vsub.s32 0, %v1818
      %v1820 = vrot.slane %v1788, %v1819
      %v1822 = vmul.f32 %v1814, %v1820
      %v1823 = vmul.f32 %v1815, %v1820
      %v1825 = vlaneseq
      %v1826 = vshrl.u32 %v1825, 7
      %v1827 = vsub.s32 0, %v1826
      %v1828 = vrot.slane %v1789, %v1827
      %v1830 = vadd.f32 %v1822, %v1828
      %v1831 = vadd.f32 %v1823, %v1828
      %v1832 = vpack.c.bf16 %v1831, %v1830
      %v1833 = vld [vmem:[%s657] sm:$0xf]
      %v1834 = vld [vmem:[%s657 + $0x4] sm:$0xf]
      %v1835 = vld [vmem:[%s657 + $0x8] sm:$0xf]
      %v1836 = vld [vmem:[%s657 + $0xc] sm:$0xf]
      %v1837 = vld [vmem:[%s660] sm:$0x1]
      %v1839 = vlaneseq
      %v1840 = vshrl.u32 %v1839, 7
      %v1841 = vsub.s32 0, %v1840
      %v1842 = vrot.slane %v1837, %v1841
      %v1848 = vunpack.c.l.b16 %v1833
      %v1849 = vunpack.c.l.b16 %v1834
      %v1850 = vunpack.c.l.b16 %v1835
      %v1851 = vunpack.c.l.b16 %v1836
      %v1852 = vpack.c.b16 %v1849, %v1848
      %v1853 = vpack.c.b16 %v1851, %v1850
      %v1857 = vsel %vm689, %v1832, 0
      %1859 = vmatprep.subr.bf16.mxu0 0
      %1860 = vmatpush1.bf16.msra.mxu0 %v1852
      %1861 = vmatprep.subr.bf16.mxu0 0
      %1862 = vmatpush1.bf16.msra.mxu0 %v1853
      %1863 = vmatprep.subr.bf16.mxu0 0
      %1864 = vmatpush1.bf16.msra.mxu0 0
      %1865 = vmatprep.subr.bf16.mxu0 0
      %1866 = vmatpush1.bf16.msra.mxu0 0
      %1867 = vmatprep.subr.bf16.mxu0 0
      %1868 = vmatpush1.bf16.msra.mxu0 0
      %1869 = vmatprep.subr.bf16.mxu0 0
      %1870 = vmatpush1.bf16.msra.mxu0 0
      %1871 = vmatprep.subr.bf16.mxu0 0
      %1872 = vmatpush1.bf16.msra.mxu0 0
      %1873 = vmatprep.subr.bf16.mxu0 0
      %1874 = vmatpush1.bf16.msra.mxu0 0
      %1875 = vmatprep.subr.bf16.mxu0 0
      %1876 = vmatpush1.bf16.msra.mxu0 0
      %1877 = vmatprep.subr.bf16.mxu0 0
      %1878 = vmatpush1.bf16.msra.mxu0 0
      %1879 = vmatprep.subr.bf16.mxu0 0
      %1880 = vmatpush1.bf16.msra.mxu0 0
      %1881 = vmatprep.subr.bf16.mxu0 0
      %1882 = vmatpush1.bf16.msra.mxu0 0
      %1883 = vmatprep.subr.bf16.mxu0 0
      %1884 = vmatpush1.bf16.msra.mxu0 0
      %1885 = vmatprep.subr.bf16.mxu0 0
      %1886 = vmatpush1.bf16.msra.mxu0 0
      %1887 = vmatprep.subr.bf16.mxu0 0
      %1888 = vmatpush1.bf16.msra.mxu0 0
      %1889 = vmatprep.subr.bf16.mxu0 0
      %1890 = vmatpush1.bf16.msra.mxu0 0
      %1891 = vmatprep.mubr.bf16.mxu0 0
      %1892 = vmatmul.mubr.bf16.gmra.mrb[0].mxu0 %v1857
      %v1893 = vpop.f32.mrb[0].mxu0
      %v1894 = vadd.f32 %v1842, %v1893
      %v1895 = vpop.f32.mrb[0].mxu0
      %v1896 = vpop.f32.mrb[0].mxu0
      %v1897 = vadd.f32 %v1842, %v1896
      %v1898 = vpop.f32.mrb[0].mxu0
      %1899 = vdwg.mxu0
      %v1900 = vmul.f32 %v1894, 1.702
      %v1901 = vmul.f32 %v1897, 1.702
      %v1902 = vxor.u32 %v1900, 2147483648
      %v1903 = vxor.u32 %v1901, 2147483648
      %v1904 = vmul.f32 %v1902, 1.442695
      %v1905 = vpow.pop %v1904
      %v1906 = vmul.f32 %v1903, 1.442695
      %v1907 = vpow.pop %v1906
      %v1908 = vadd.f32 %v1905, 1.0
      %v1909 = vadd.f32 %v1907, 1.0
      %v1910 = vrcp.pop %v1908
      %v1911 = vmul.f32 1.0, %v1910
      %v1912 = vrcp.pop %v1909
      %v1913 = vmul.f32 1.0, %v1912
      %v1914 = vmul.f32 %v1894, %v1911
      %v1915 = vmul.f32 %v1897, %v1913
      %v1916 = vpack.c.bf16 %v1915, %v1914
      %v1917 = vld [vmem:[%s665] sm:$0xf]
      %v1918 = vld [vmem:[%s665 + $0x4] sm:$0xf]
      %v1919 = vld [vmem:[%s665 + $0x8] sm:$0xf]
      %v1920 = vld [vmem:[%s665 + $0xc] sm:$0xf]
      %v1921 = vld [vmem:[%s665 + $0x10] sm:$0xf]
      %v1922 = vld [vmem:[%s665 + $0x14] sm:$0xf]
      %v1923 = vld [vmem:[%s665 + $0x18] sm:$0xf]
      %v1924 = vld [vmem:[%s665 + $0x1c] sm:$0xf]
      %v1925 = vld [vmem:[%s665 + $0x20] sm:$0xf]
      %v1926 = vld [vmem:[%s665 + $0x24] sm:$0xf]
      %v1927 = vld [vmem:[%s665 + $0x28] sm:$0xf]
      %v1928 = vld [vmem:[%s665 + $0x2c] sm:$0xf]
      %v1929 = vld [vmem:[%s665 + $0x30] sm:$0xf]
      %v1930 = vld [vmem:[%s665 + $0x34] sm:$0xf]
      %v1931 = vld [vmem:[%s665 + $0x38] sm:$0xf]
      %v1932 = vld [vmem:[%s665 + $0x3c] sm:$0xf]
      %v1933 = vld [vmem:[%s668] sm:$0x1]
      %v1935 = vlaneseq
      %v1936 = vshrl.u32 %v1935, 7
      %v1937 = vsub.s32 0, %v1936
      %v1938 = vrot.slane %v1933, %v1937
      %v1956 = vunpack.c.l.b16 %v1917
      %v1957 = vunpack.c.l.b16 %v1918
      %v1958 = vunpack.c.l.b16 %v1919
      %v1959 = vunpack.c.l.b16 %v1920
      %v1960 = vunpack.c.l.b16 %v1921
      %v1961 = vunpack.c.l.b16 %v1922
      %v1962 = vunpack.c.l.b16 %v1923
      %v1963 = vunpack.c.l.b16 %v1924
      %v1964 = vunpack.c.l.b16 %v1925
      %v1965 = vunpack.c.l.b16 %v1926
      %v1966 = vunpack.c.l.b16 %v1927
      %v1967 = vunpack.c.l.b16 %v1928
      %v1968 = vunpack.c.l.b16 %v1929
      %v1969 = vunpack.c.l.b16 %v1930
      %v1970 = vunpack.c.l.b16 %v1931
      %v1971 = vunpack.c.l.b16 %v1932
      %v1972 = vpack.c.b16 %v1957, %v1956
      %v1973 = vpack.c.b16 %v1959, %v1958
      %v1974 = vpack.c.b16 %v1961, %v1960
      %v1975 = vpack.c.b16 %v1963, %v1962
      %v1976 = vpack.c.b16 %v1965, %v1964
      %v1977 = vpack.c.b16 %v1967, %v1966
      %v1978 = vpack.c.b16 %v1969, %v1968
      %v1979 = vpack.c.b16 %v1971, %v1970
      %1988 = vmatprep.subr.bf16.mxu0 0
      %1989 = vmatpush1.bf16.msra.mxu0 %v1972
      %1990 = vmatprep.subr.bf16.mxu0 0
      %1991 = vmatpush1.bf16.msra.mxu0 %v1973
      %1992 = vmatprep.subr.bf16.mxu0 0
      %1993 = vmatpush1.bf16.msra.mxu0 %v1974
      %1994 = vmatprep.subr.bf16.mxu0 0
      %1995 = vmatpush1.bf16.msra.mxu0 %v1975
      %1996 = vmatprep.subr.bf16.mxu0 0
      %1997 = vmatpush1.bf16.msra.mxu0 %v1976
      %1998 = vmatprep.subr.bf16.mxu0 0
      %1999 = vmatpush1.bf16.msra.mxu0 %v1977
      %2000 = vmatprep.subr.bf16.mxu0 0
      %2001 = vmatpush1.bf16.msra.mxu0 %v1978
      %2002 = vmatprep.subr.bf16.mxu0 0
      %2003 = vmatpush1.bf16.msra.mxu0 %v1979
      %2004 = vmatprep.subr.bf16.mxu0 0
      %2005 = vmatpush1.bf16.msra.mxu0 0
      %2006 = vmatprep.subr.bf16.mxu0 0
      %2007 = vmatpush1.bf16.msra.mxu0 0
      %2008 = vmatprep.subr.bf16.mxu0 0
      %2009 = vmatpush1.bf16.msra.mxu0 0
      %2010 = vmatprep.subr.bf16.mxu0 0
      %2011 = vmatpush1.bf16.msra.mxu0 0
      %2012 = vmatprep.subr.bf16.mxu0 0
      %2013 = vmatpush1.bf16.msra.mxu0 0
      %2014 = vmatprep.subr.bf16.mxu0 0
      %2015 = vmatpush1.bf16.msra.mxu0 0
      %2016 = vmatprep.subr.bf16.mxu0 0
      %2017 = vmatpush1.bf16.msra.mxu0 0
      %2018 = vmatprep.subr.bf16.mxu0 0
      %2019 = vmatpush1.bf16.msra.mxu0 0
      %2020 = vmatprep.mubr.bf16.mxu0 0
      %2021 = vmatmul.mubr.bf16.gmra.mrb[0].mxu0 %v1916
      %v2022 = vpop.f32.mrb[0].mxu0
      %v2023 = vadd.f32 %v1938, %v2022
      %v2024 = vpop.f32.mrb[0].mxu0
      %v2025 = vpop.f32.mrb[0].mxu0
      %v2026 = vadd.f32 %v1938, %v2025
      %v2027 = vpop.f32.mrb[0].mxu0
      %2028 = vdwg.mxu0
      %v2029 = vadd.f32 %v1786, %v2023
      %v2030 = vadd.f32 %v1787, %v2026
      %2031 = vst.msk [vmem:[%s673] sm:$0xff] %vm689, %v2029
      %2032 = vst.msk [vmem:[%s673 + $0x8] sm:$0xff] %vm689, %v2030
      %s2033 = smul.u32 2, %s29
      %p2034 = scmp.lt.s32.totalorder %s2033, 1
      %s2035 = scalar_select %p2034, %s2033, 1
      %s2036 = smul.addr %s2035, 8
      %s2037 = scalar_lea.vmem %s14, %s2036
      // Predicated region
      $region81: #{clip_forward.4} parent=75 // pred_check
        %p2038 = pneg %p414
      $region82: #{clip_forward.4} parent=75 // pred_check_branch
        %2040 = sbr.rel (%p2038) target = $region84
      $region83: #{clip_forward.4} parent=75 // pred_region
        %s2041 = smul.u32 2, %s29
      $region84: #{clip_forward.4} parent=75 // pred_fallthru
        _
      // Predicated region
      $region85: #{clip_forward.4} parent=75 // pred_check
        %p2042 = pneg %p414
      $region86: #{clip_forward.4} parent=75 // pred_check_branch
        %2044 = sbr.rel (%p2042) target = $region88
      $region87: #{clip_forward.4} parent=75 // pred_region
        %s2045 = smul.u32 2, %s29
        %p2046 = scmp.lt.s32.totalorder %s2045, 1
        %s2047 = scalar_select %p2046, %s2045, 1
        %s2048 = smul.addr %s2047, 8
        %s2049 = scalar_lea.vmem %s14, %s2048
      $region88: #{clip_forward.4} parent=75 // pred_fallthru
        _
    $region76: #{clip_forward.4} parent=5 // pred_fallthru
      _
    %p2050 = scmp.le.s32.totalorder 2, %s20
    // Predicated region
    $region89: #{clip_forward.4} parent=5 // pred_check
      %p2051 = pneg %p2050
    $region90: #{clip_forward.4} parent=5 // pred_check_branch
      %2053 = sbr.rel (%p2051) target = $region92
    $region91: #{clip_forward.4} parent=5 // pred_region
      %s2054 = ssub.s32 %s20, 2
    $region92: #{clip_forward.4} parent=5 // pred_fallthru
      _
  $region6: #{clip_forward.4} parent=0 // loop_footer
    %s24 = sadd.s32 1, %s20
  $region7: #{clip_forward.4} parent=0 // loop_footer_branch
    %19 = sbr.rel target = $region3
  $region8: #{clip_forward.4} parent=0 // loop_exit
    _

</llo_original>
